<compile_context>
chip_gen: v5e
topology: v5e:2x2
jax: 0.10.0
libtpu: 0.0.40
codegen_flags: <defaults>
</compile_context>

<pallas_src>
import functools

import jax
import jax.numpy as jnp
from jax.experimental import pallas as pl
from jax.experimental.pallas import tpu as pltpu


def _round_up(x, m):
    return ((x + m - 1) // m) * m


# ---------------------------------------------------------------------------
# Pallas kernel.  All shapes are padded: Bp multiple of 8 (sublanes),
# Hp / Vp multiples of 128 (lanes).  Inputs / weights are bf16, carries and
# accumulations are f32.
# ---------------------------------------------------------------------------
def _seq2seq_kernel(enc_ref,       # (S_enc, Bp, Hp) bf16 embedded encoder inputs
                    dec_ref,       # (S_dec, Bp, Hp) bf16 embedded decoder inputs
                    h0_ref,        # (Bp, Hp) f32    initial hidden state
                    wih_e_ref,     # (Hp, Hp) bf16   encoder W_ih^T
                    whh_e_ref,     # (Hp, Hp) bf16   encoder W_hh^T
                    b_e_ref,       # (1, Hp)  f32    encoder b_ih + b_hh
                    wih_d_ref,     # (Hp, Hp) bf16   decoder W_ih^T
                    whh_d_ref,     # (Hp, Hp) bf16   decoder W_hh^T
                    b_d_ref,       # (1, Hp)  f32    decoder b_ih + b_hh
                    wout_ref,      # (Hp, Vp) bf16   output Linear weight^T
                    bout_ref,      # (1, Vp)  f32    output Linear bias
                    out_ref,       # (S_dec, Bp, Vp) f32 logits (time-major)
                    enc_proj_ref,  # scratch (S_enc, Bp, Hp) f32
                    dec_proj_ref): # scratch (S_dec, Bp, Hp) f32
    s_enc, bp, hp = enc_ref.shape
    s_dec = dec_ref.shape[0]

    # ---- Encoder input projections for all timesteps at once (bf16 MXU,
    # f32 accumulate); only the serial h @ W_hh + tanh stays on the critical
    # path of the recurrence.
    enc_x = enc_ref[...].reshape(s_enc * bp, hp)
    enc_proj_ref[...] = (
        jnp.dot(enc_x, wih_e_ref[...], preferred_element_type=jnp.float32)
        + b_e_ref[...]
    ).reshape(s_enc, bp, hp)

    # ---- Encoder recurrence, with the decoder input projections interleaved
    # one-per-step as MXU filler (keeps their pushes/pops off the MRF ahead of
    # encoder step 0 on v5e/v6e).
    whh_e = whh_e_ref[...]          # bf16: 8 vregs, stays resident
    wih_d = wih_d_ref[...]
    b_d = b_d_ref[...]
    h = h0_ref[...]                 # f32 carry
    n_inter = min(s_enc, s_dec)
    for t in range(s_enc):
        if t < n_inter:
            dec_proj_ref[t] = (
                jnp.dot(dec_ref[t], wih_d, preferred_element_type=jnp.float32)
                + b_d)
        h = jnp.tanh(
            enc_proj_ref[t]
            + jnp.dot(h.astype(jnp.bfloat16), whh_e,
                      preferred_element_type=jnp.float32))
    for t in range(n_inter, s_dec):     # remainder if S_dec > S_enc
        dec_proj_ref[t] = (
            jnp.dot(dec_ref[t], wih_d, preferred_element_type=jnp.float32)
            + b_d)

    # ---- Decoder recurrence with the (small-V) output projection fused per
    # step: the MXU is idle between serial W_hh matmuls, so the per-step
    # (Bp,Hp)@(Hp,Vp) projection hides under the recurrence latency, and each
    # out_ref[t] store is a full-lane unmasked vst.
    whh_d = whh_d_ref[...]          # loaded just-in-time (vreg pressure)
    wout = wout_ref[...]
    bout = bout_ref[...]
    for t in range(s_dec):
        h = jnp.tanh(
            dec_proj_ref[t]
            + jnp.dot(h.astype(jnp.bfloat16), whh_d,
                      preferred_element_type=jnp.float32))
        out_ref[t] = (
            jnp.dot(h.astype(jnp.bfloat16), wout,
                    preferred_element_type=jnp.float32) + bout)


# ---------------------------------------------------------------------------
# One-time parameter preparation: transpose + zero-pad + bf16 cast weights,
# fold the two RNN biases, pad the embedding tables along H.
# ---------------------------------------------------------------------------
def prepare_params(params):
    H = params["Wih_e"].shape[0]
    V = params["Wout"].shape[0]
    Hp = _round_up(H, 128)
    Vp = _round_up(V, 128)

    def pad_t(w, cols):          # (out, in) f32 -> (Hp, cols) bf16, transposed
        w_t = w.T.astype(jnp.bfloat16)
        return jnp.pad(w_t, ((0, Hp - w_t.shape[0]), (0, cols - w_t.shape[1])))

    def pad_emb(e):              # (voc, H) f32 -> (voc, Hp) bf16
        return jnp.pad(e.astype(jnp.bfloat16), ((0, 0), (0, Hp - e.shape[1])))

    def pad_bias(b, cols):       # (n,) f32 -> (1, cols) f32
        return jnp.pad(b.reshape(1, -1).astype(jnp.float32),
                       ((0, 0), (0, cols - b.shape[0])))

    return {
        "emb_cn": pad_emb(params["emb_cn"]),
        "emb_en": pad_emb(params["emb_en"]),
        "wih_e": pad_t(params["Wih_e"], Hp),
        "whh_e": pad_t(params["Whh_e"], Hp),
        "b_e": pad_bias(params["b_ih_e"] + params["b_hh_e"], Hp),
        "wih_d": pad_t(params["Wih_d"], Hp),
        "whh_d": pad_t(params["Whh_d"], Hp),
        "b_d": pad_bias(params["b_ih_d"] + params["b_hh_d"], Hp),
        "wout": pad_t(params["Wout"], Vp),
        "bout": pad_bias(params["b_out"], Vp),
    }


# ---------------------------------------------------------------------------
# Wrapper: time-major embedding gathers + batch padding + pallas_call
# ---------------------------------------------------------------------------
@functools.partial(jax.jit, static_argnames=("voc_en",))
def seq2seq_forward(enc_tokens, hidden0, dec_tokens, prep, voc_en):
    """Mirrors Seq2Seq.forward(enc_input, hidden, dec_input).

    enc_tokens: (B, S_enc) int32
    hidden0:    (1, B, H)  float32  (num_layers=1, as in nn.RNN)
    dec_tokens: (B, S_dec) int32
    prep:       output of prepare_params(params)
    returns:    (B, S_dec, voc_en) float32 decoder logits
    """
    Hp = prep["emb_cn"].shape[1]
    Vp = prep["wout"].shape[1]
    B, S_enc = enc_tokens.shape
    S_dec = dec_tokens.shape[1]
    H = hidden0.shape[-1]
    Bp = _round_up(B, 8)

    # Time-major embedding gathers (glue, plain JAX gather); tables already
    # H-padded and bf16.
    enc_emb = prep["emb_cn"][enc_tokens.T]          # (S_enc, B, Hp) bf16
    dec_emb = prep["emb_en"][dec_tokens.T]          # (S_dec, B, Hp) bf16
    enc_emb = jnp.pad(enc_emb, ((0, 0), (0, Bp - B), (0, 0)))
    dec_emb = jnp.pad(dec_emb, ((0, 0), (0, Bp - B), (0, 0)))
    h0 = jnp.pad(hidden0[0].astype(jnp.float32),
                 ((0, Bp - B), (0, Hp - H)))        # (Bp, Hp) f32

    # VMEM budget from actual buffer bytes (+ headroom), not a blanket 32 MiB.
    buf_bytes = (
        (S_enc + S_dec) * Bp * Hp * 2           # bf16 embedded inputs
        + Bp * Hp * 4                           # h0
        + 4 * Hp * Hp * 2 + Hp * Vp * 2         # bf16 weights
        + 2 * Hp * 4 + Vp * 4                   # biases
        + S_dec * Bp * Vp * 4                   # logits out
        + (S_enc + S_dec) * Bp * Hp * 4)        # projection scratches
    vmem_limit = min(2 * int(buf_bytes) + (16 << 20), 128 << 20)

    vmem = pl.BlockSpec(memory_space=pltpu.MemorySpace.VMEM)
    out_padded = pl.pallas_call(
        _seq2seq_kernel,
        out_shape=jax.ShapeDtypeStruct((S_dec, Bp, Vp), jnp.float32),
        in_specs=[vmem] * 11,
        out_specs=vmem,
        scratch_shapes=[
            pltpu.VMEM((S_enc, Bp, Hp), jnp.float32),   # enc input projections
            pltpu.VMEM((S_dec, Bp, Hp), jnp.float32),   # dec input projections
        ],
        compiler_params=pltpu.CompilerParams(vmem_limit_bytes=vmem_limit),
    )(enc_emb, dec_emb, h0,
      prep["wih_e"], prep["whh_e"], prep["b_e"],
      prep["wih_d"], prep["whh_d"], prep["b_d"],
      prep["wout"], prep["bout"])

    # Slice padding off and return batch-first (B, S_dec, V) logits.
    out = out_padded[:, :B, :voc_en]
    return jnp.transpose(out, (1, 0, 2))


# ---------------------------------------------------------------------------
# Pure-JAX references
# ---------------------------------------------------------------------------
def seq2seq_reference(enc_tokens, hidden0, dec_tokens, params):
    """f32 end-to-end (matches nn.Embedding + nn.RNN(batch_first) + nn.Linear)."""
    enc_emb = params["emb_cn"][enc_tokens]   # (B, S_enc, H)
    dec_emb = params["emb_en"][dec_tokens]   # (B, S_dec, H)
    h = hidden0[0]                           # (B, H)

    for t in range(enc_emb.shape[1]):
        h = jnp.tanh(enc_emb[:, t] @ params["Wih_e"].T + params["b_ih_e"]
                     + h @ params["Whh_e"].T + params["b_hh_e"])

    outs = []
    for t in range(dec_emb.shape[1]):
        h = jnp.tanh(dec_emb[:, t] @ params["Wih_d"].T + params["b_ih_d"]
                     + h @ params["Whh_d"].T + params["b_hh_d"])
        outs.append(h @ params["Wout"].T + params["b_out"])
    return jnp.stack(outs, axis=1)           # (B, S_dec, V_en)


def seq2seq_reference_bf16(enc_tokens, hidden0, dec_tokens, params):
    """Same math with bf16 matmul operands + f32 accumulation (kernel numerics)."""
    def mm(a, w):        # a @ w.T, bf16 operands, f32 accumulate
        return jnp.dot(a.astype(jnp.bfloat16), w.astype(jnp.bfloat16).T,
                       preferred_element_type=jnp.float32)

    enc_emb = params["emb_cn"][enc_tokens]
    dec_emb = params["emb_en"][dec_tokens]
    h = hidden0[0]
    b_e = params["b_ih_e"] + params["b_hh_e"]
    b_d = params["b_ih_d"] + params["b_hh_d"]

    for t in range(enc_emb.shape[1]):
        h = jnp.tanh(mm(enc_emb[:, t], params["Wih_e"]) + b_e
                     + mm(h, params["Whh_e"]))

    outs = []
    for t in range(dec_emb.shape[1]):
        h = jnp.tanh(mm(dec_emb[:, t], params["Wih_d"]) + b_d
                     + mm(h, params["Whh_d"]))
        outs.append(mm(h, params["Wout"]) + params["b_out"])
    return jnp.stack(outs, axis=1)


# ---------------------------------------------------------------------------
# Deterministic parameter init (PyTorch-style uniform(-1/sqrt(H), 1/sqrt(H)))
# ---------------------------------------------------------------------------
def init_params(key, voc_cn, voc_en, hidden):
    keys = jax.random.split(key, 12)
    bound = 1.0 / jnp.sqrt(jnp.float32(hidden))

    def u(k, shape):
        return jax.random.uniform(k, shape, jnp.float32, -bound, bound)

    return {
        # Encoder: nn.Embedding(voc_cn, H), nn.RNN(H, H)
        "emb_cn": jax.random.normal(keys[0], (voc_cn, hidden), jnp.float32),
        "Wih_e": u(keys[1], (hidden, hidden)),
        "Whh_e": u(keys[2], (hidden, hidden)),
        "b_ih_e": u(keys[3], (hidden,)),
        "b_hh_e": u(keys[4], (hidden,)),
        # Decoder: nn.Embedding(voc_en, H), nn.RNN(H, H), nn.Linear(H, voc_en)
        "emb_en": jax.random.normal(keys[5], (voc_en, hidden), jnp.float32),
        "Wih_d": u(keys[6], (hidden, hidden)),
        "Whh_d": u(keys[7], (hidden, hidden)),
        "b_ih_d": u(keys[8], (hidden,)),
        "b_hh_d": u(keys[9], (hidden,)),
        "Wout": u(keys[10], (voc_en, hidden)),
        "b_out": u(keys[11], (voc_en,)),
    }


if __name__ == "__main__":
    # Small shapes consistent with the module's forward.
    B, S_ENC, S_DEC = 2, 8, 8
    HIDDEN = 32            # original uses n_hidden = 128; kept small here
    VOC_CN, VOC_EN = 24, 20

    root = jax.random.PRNGKey(0)
    k_p, k_e, k_d, k_h = jax.random.split(root, 4)

    params = init_params(k_p, VOC_CN, VOC_EN, HIDDEN)
    enc_tokens = jax.random.randint(k_e, (B, S_ENC), 0, VOC_CN, jnp.int32)
    dec_tokens = jax.random.randint(k_d, (B, S_DEC), 0, VOC_EN, jnp.int32)
    hidden0 = jax.random.normal(k_h, (1, B, HIDDEN), jnp.float32)

    prep = prepare_params(params)      # one-time layout/cast prep (off hot path)
    out = seq2seq_forward(enc_tokens, hidden0, dec_tokens, prep, voc_en=VOC_EN)
    out = jax.block_until_ready(out)
    assert out.shape == (B, S_DEC, VOC_EN), out.shape

    # Tight structural check against a reference with identical bf16-operand
    # / f32-accumulate MXU numerics.
    ref_bf16 = seq2seq_reference_bf16(enc_tokens, hidden0, dec_tokens, params)
    assert jnp.allclose(out, ref_bf16, rtol=2e-3, atol=2e-3), (
        float(jnp.max(jnp.abs(out - ref_bf16))))

    # Loose sanity check against the pure-f32 reference; bf16 operand rounding
    # through the 16-step recurrence bounds the achievable agreement.
    ref_f32 = seq2seq_reference(enc_tokens, hidden0, dec_tokens, params)
    assert jnp.allclose(out, ref_f32, rtol=5e-2, atol=5e-2), (
        float(jnp.max(jnp.abs(out - ref_f32))))

    print("KERNEL_OK")
</pallas_src>

<mosaic_0001>
module attributes {stable_mosaic.version = 11 : i64} {
  func.func @_seq2seq_kernel(%arg0: memref<8x8x128xbf16, #tpu.memory_space<vmem>>, %arg1: memref<8x8x128xbf16, #tpu.memory_space<vmem>>, %arg2: memref<8x128xf32, #tpu.memory_space<vmem>>, %arg3: memref<128x128xbf16, #tpu.memory_space<vmem>>, %arg4: memref<128x128xbf16, #tpu.memory_space<vmem>>, %arg5: memref<1x128xf32, #tpu.memory_space<vmem>>, %arg6: memref<128x128xbf16, #tpu.memory_space<vmem>>, %arg7: memref<128x128xbf16, #tpu.memory_space<vmem>>, %arg8: memref<1x128xf32, #tpu.memory_space<vmem>>, %arg9: memref<128x128xbf16, #tpu.memory_space<vmem>>, %arg10: memref<1x128xf32, #tpu.memory_space<vmem>>, %arg11: memref<8x8x128xf32, #tpu.memory_space<vmem>>, %arg12: memref<8x8x128xf32, #tpu.memory_space<vmem>>, %arg13: memref<8x8x128xf32, #tpu.memory_space<vmem>>) attributes {dimension_semantics = [], scalar_prefetch = 0 : i64, scratch_operands = 2 : i64, tpu.core_type = #tpu.core_type<tc>} {
    %c0 = arith.constant 0 : index
    %c0_0 = arith.constant 0 : index
    %c0_1 = arith.constant 0 : index
    %0 = vector.load %arg0[%c0, %c0_0, %c0_1] : memref<8x8x128xbf16, #tpu.memory_space<vmem>>, vector<8x8x128xbf16>
    %1 = vector.shape_cast %0 : vector<8x8x128xbf16> to vector<64x128xbf16>
    %c0_2 = arith.constant 0 : index
    %c0_3 = arith.constant 0 : index
    %2 = vector.load %arg3[%c0_2, %c0_3] : memref<128x128xbf16, #tpu.memory_space<vmem>>, vector<128x128xbf16>
    %cst = arith.constant dense<0.000000e+00> : vector<64x128xf32>
    %3 = tpu.matmul %1, %2, %cst {dimension_numbers = #tpu.dot_dimension_numbers<[1], [0], [0], [1], [0, 0, 1, 1], [], []>} : vector<64x128xbf16>, vector<128x128xbf16>, vector<64x128xf32> -> vector<64x128xf32>
    %c0_4 = arith.constant 0 : index
    %c0_5 = arith.constant 0 : index
    %4 = vector.load %arg5[%c0_4, %c0_5] : memref<1x128xf32, #tpu.memory_space<vmem>>, vector<1x128xf32>
    %5 = vector.broadcast %4 : vector<1x128xf32> to vector<64x128xf32>
    %6 = arith.addf %3, %5 : vector<64x128xf32>
    %7 = vector.shape_cast %6 : vector<64x128xf32> to vector<8x8x128xf32>
    %c0_6 = arith.constant 0 : index
    %c0_7 = arith.constant 0 : index
    %c0_8 = arith.constant 0 : index
    %8 = vector.load %arg12[%c0_6, %c0_7, %c0_8] : memref<8x8x128xf32, #tpu.memory_space<vmem>>, vector<8x8x128xf32>
    tpu.vector_store %arg12[%c0_6, %c0_7, %c0_8], %7 {strides = array<i32>} : memref<8x8x128xf32, #tpu.memory_space<vmem>>, vector<8x8x128xf32>,
    %c0_9 = arith.constant 0 : index
    %c0_10 = arith.constant 0 : index
    %9 = vector.load %arg4[%c0_9, %c0_10] : memref<128x128xbf16, #tpu.memory_space<vmem>>, vector<128x128xbf16>
    %c0_11 = arith.constant 0 : index
    %c0_12 = arith.constant 0 : index
    %10 = vector.load %arg6[%c0_11, %c0_12] : memref<128x128xbf16, #tpu.memory_space<vmem>>, vector<128x128xbf16>
    %c0_13 = arith.constant 0 : index
    %c0_14 = arith.constant 0 : index
    %11 = vector.load %arg8[%c0_13, %c0_14] : memref<1x128xf32, #tpu.memory_space<vmem>>, vector<1x128xf32>
    %c0_15 = arith.constant 0 : index
    %c0_16 = arith.constant 0 : index
    %12 = vector.load %arg2[%c0_15, %c0_16] : memref<8x128xf32, #tpu.memory_space<vmem>>, vector<8x128xf32>
    %c0_17 = arith.constant 0 : index
    %c0_18 = arith.constant 0 : index
    %c0_19 = arith.constant 0 : index
    %13 = vector.load %arg1[%c0_17, %c0_18, %c0_19] : memref<8x8x128xbf16, #tpu.memory_space<vmem>>, vector<1x8x128xbf16>
    %14 = vector.shape_cast %13 : vector<1x8x128xbf16> to vector<8x128xbf16>
    %cst_20 = arith.constant dense<0.000000e+00> : vector<8x128xf32>
    %15 = tpu.matmul %14, %10, %cst_20 {dimension_numbers = #tpu.dot_dimension_numbers<[1], [0], [0], [1], [0, 0, 1, 1], [], []>} : vector<8x128xbf16>, vector<128x128xbf16>, vector<8x128xf32> -> vector<8x128xf32>
    %16 = vector.broadcast %11 : vector<1x128xf32> to vector<8x128xf32>
    %17 = arith.addf %15, %16 : vector<8x128xf32>
    %c0_21 = arith.constant 0 : index
    %c0_22 = arith.constant 0 : index
    %c0_23 = arith.constant 0 : index
    %18 = vector.load %arg13[%c0_21, %c0_22, %c0_23] : memref<8x8x128xf32, #tpu.memory_space<vmem>>, vector<1x8x128xf32>
    %19 = vector.shape_cast %18 : vector<1x8x128xf32> to vector<8x128xf32>
    %20 = vector.shape_cast %17 : vector<8x128xf32> to vector<1x8x128xf32>
    tpu.vector_store %arg13[%c0_21, %c0_22, %c0_23], %20 {strides = array<i32>} : memref<8x8x128xf32, #tpu.memory_space<vmem>>, vector<1x8x128xf32>,
    %c0_24 = arith.constant 0 : index
    %c0_25 = arith.constant 0 : index
    %c0_26 = arith.constant 0 : index
    %21 = vector.load %arg12[%c0_24, %c0_25, %c0_26] : memref<8x8x128xf32, #tpu.memory_space<vmem>>, vector<1x8x128xf32>
    %22 = vector.shape_cast %21 : vector<1x8x128xf32> to vector<8x128xf32>
    %23 = arith.truncf %12 : vector<8x128xf32> to vector<8x128xbf16>
    %cst_27 = arith.constant dense<0.000000e+00> : vector<8x128xf32>
    %24 = tpu.matmul %23, %9, %cst_27 {dimension_numbers = #tpu.dot_dimension_numbers<[1], [0], [0], [1], [0, 0, 1, 1], [], []>} : vector<8x128xbf16>, vector<128x128xbf16>, vector<8x128xf32> -> vector<8x128xf32>
    %25 = arith.addf %22, %24 : vector<8x128xf32>
    %26 = math.tanh %25 : vector<8x128xf32>
    %c1 = arith.constant 1 : index
    %c0_28 = arith.constant 0 : index
    %c0_29 = arith.constant 0 : index
    %27 = vector.load %arg1[%c1, %c0_28, %c0_29] : memref<8x8x128xbf16, #tpu.memory_space<vmem>>, vector<1x8x128xbf16>
    %28 = vector.shape_cast %27 : vector<1x8x128xbf16> to vector<8x128xbf16>
    %cst_30 = arith.constant dense<0.000000e+00> : vector<8x128xf32>
    %29 = tpu.matmul %28, %10, %cst_30 {dimension_numbers = #tpu.dot_dimension_numbers<[1], [0], [0], [1], [0, 0, 1, 1], [], []>} : vector<8x128xbf16>, vector<128x128xbf16>, vector<8x128xf32> -> vector<8x128xf32>
    %30 = vector.broadcast %11 : vector<1x128xf32> to vector<8x128xf32>
    %31 = arith.addf %29, %30 : vector<8x128xf32>
    %c1_31 = arith.constant 1 : index
    %c0_32 = arith.constant 0 : index
    %c0_33 = arith.constant 0 : index
    %32 = vector.load %arg13[%c1_31, %c0_32, %c0_33] : memref<8x8x128xf32, #tpu.memory_space<vmem>>, vector<1x8x128xf32>
    %33 = vector.shape_cast %32 : vector<1x8x128xf32> to vector<8x128xf32>
    %34 = vector.shape_cast %31 : vector<8x128xf32> to vector<1x8x128xf32>
    tpu.vector_store %arg13[%c1_31, %c0_32, %c0_33], %34 {strides = array<i32>} : memref<8x8x128xf32, #tpu.memory_space<vmem>>, vector<1x8x128xf32>,
    %c1_34 = arith.constant 1 : index
    %c0_35 = arith.constant 0 : index
    %c0_36 = arith.constant 0 : index
    %35 = vector.load %arg12[%c1_34, %c0_35, %c0_36] : memref<8x8x128xf32, #tpu.memory_space<vmem>>, vector<1x8x128xf32>
    %36 = vector.shape_cast %35 : vector<1x8x128xf32> to vector<8x128xf32>
    %37 = arith.truncf %26 : vector<8x128xf32> to vector<8x128xbf16>
    %cst_37 = arith.constant dense<0.000000e+00> : vector<8x128xf32>
    %38 = tpu.matmul %37, %9, %cst_37 {dimension_numbers = #tpu.dot_dimension_numbers<[1], [0], [0], [1], [0, 0, 1, 1], [], []>} : vector<8x128xbf16>, vector<128x128xbf16>, vector<8x128xf32> -> vector<8x128xf32>
    %39 = arith.addf %36, %38 : vector<8x128xf32>
    %40 = math.tanh %39 : vector<8x128xf32>
    %c2 = arith.constant 2 : index
    %c0_38 = arith.constant 0 : index
    %c0_39 = arith.constant 0 : index
    %41 = vector.load %arg1[%c2, %c0_38, %c0_39] : memref<8x8x128xbf16, #tpu.memory_space<vmem>>, vector<1x8x128xbf16>
    %42 = vector.shape_cast %41 : vector<1x8x128xbf16> to vector<8x128xbf16>
    %cst_40 = arith.constant dense<0.000000e+00> : vector<8x128xf32>
    %43 = tpu.matmul %42, %10, %cst_40 {dimension_numbers = #tpu.dot_dimension_numbers<[1], [0], [0], [1], [0, 0, 1, 1], [], []>} : vector<8x128xbf16>, vector<128x128xbf16>, vector<8x128xf32> -> vector<8x128xf32>
    %44 = vector.broadcast %11 : vector<1x128xf32> to vector<8x128xf32>
    %45 = arith.addf %43, %44 : vector<8x128xf32>
    %c2_41 = arith.constant 2 : index
    %c0_42 = arith.constant 0 : index
    %c0_43 = arith.constant 0 : index
    %46 = vector.load %arg13[%c2_41, %c0_42, %c0_43] : memref<8x8x128xf32, #tpu.memory_space<vmem>>, vector<1x8x128xf32>
    %47 = vector.shape_cast %46 : vector<1x8x128xf32> to vector<8x128xf32>
    %48 = vector.shape_cast %45 : vector<8x128xf32> to vector<1x8x128xf32>
    tpu.vector_store %arg13[%c2_41, %c0_42, %c0_43], %48 {strides = array<i32>} : memref<8x8x128xf32, #tpu.memory_space<vmem>>, vector<1x8x128xf32>,
    %c2_44 = arith.constant 2 : index
    %c0_45 = arith.constant 0 : index
    %c0_46 = arith.constant 0 : index
    %49 = vector.load %arg12[%c2_44, %c0_45, %c0_46] : memref<8x8x128xf32, #tpu.memory_space<vmem>>, vector<1x8x128xf32>
    %50 = vector.shape_cast %49 : vector<1x8x128xf32> to vector<8x128xf32>
    %51 = arith.truncf %40 : vector<8x128xf32> to vector<8x128xbf16>
    %cst_47 = arith.constant dense<0.000000e+00> : vector<8x128xf32>
    %52 = tpu.matmul %51, %9, %cst_47 {dimension_numbers = #tpu.dot_dimension_numbers<[1], [0], [0], [1], [0, 0, 1, 1], [], []>} : vector<8x128xbf16>, vector<128x128xbf16>, vector<8x128xf32> -> vector<8x128xf32>
    %53 = arith.addf %50, %52 : vector<8x128xf32>
    %54 = math.tanh %53 : vector<8x128xf32>
    %c3 = arith.constant 3 : index
    %c0_48 = arith.constant 0 : index
    %c0_49 = arith.constant 0 : index
    %55 = vector.load %arg1[%c3, %c0_48, %c0_49] : memref<8x8x128xbf16, #tpu.memory_space<vmem>>, vector<1x8x128xbf16>
    %56 = vector.shape_cast %55 : vector<1x8x128xbf16> to vector<8x128xbf16>
    %cst_50 = arith.constant dense<0.000000e+00> : vector<8x128xf32>
    %57 = tpu.matmul %56, %10, %cst_50 {dimension_numbers = #tpu.dot_dimension_numbers<[1], [0], [0], [1], [0, 0, 1, 1], [], []>} : vector<8x128xbf16>, vector<128x128xbf16>, vector<8x128xf32> -> vector<8x128xf32>
    %58 = vector.broadcast %11 : vector<1x128xf32> to vector<8x128xf32>
    %59 = arith.addf %57, %58 : vector<8x128xf32>
    %c3_51 = arith.constant 3 : index
    %c0_52 = arith.constant 0 : index
    %c0_53 = arith.constant 0 : index
    %60 = vector.load %arg13[%c3_51, %c0_52, %c0_53] : memref<8x8x128xf32, #tpu.memory_space<vmem>>, vector<1x8x128xf32>
    %61 = vector.shape_cast %60 : vector<1x8x128xf32> to vector<8x128xf32>
    %62 = vector.shape_cast %59 : vector<8x128xf32> to vector<1x8x128xf32>
    tpu.vector_store %arg13[%c3_51, %c0_52, %c0_53], %62 {strides = array<i32>} : memref<8x8x128xf32, #tpu.memory_space<vmem>>, vector<1x8x128xf32>,
    %c3_54 = arith.constant 3 : index
    %c0_55 = arith.constant 0 : index
    %c0_56 = arith.constant 0 : index
    %63 = vector.load %arg12[%c3_54, %c0_55, %c0_56] : memref<8x8x128xf32, #tpu.memory_space<vmem>>, vector<1x8x128xf32>
    %64 = vector.shape_cast %63 : vector<1x8x128xf32> to vector<8x128xf32>
    %65 = arith.truncf %54 : vector<8x128xf32> to vector<8x128xbf16>
    %cst_57 = arith.constant dense<0.000000e+00> : vector<8x128xf32>
    %66 = tpu.matmul %65, %9, %cst_57 {dimension_numbers = #tpu.dot_dimension_numbers<[1], [0], [0], [1], [0, 0, 1, 1], [], []>} : vector<8x128xbf16>, vector<128x128xbf16>, vector<8x128xf32> -> vector<8x128xf32>
    %67 = arith.addf %64, %66 : vector<8x128xf32>
    %68 = math.tanh %67 : vector<8x128xf32>
    %c4 = arith.constant 4 : index
    %c0_58 = arith.constant 0 : index
    %c0_59 = arith.constant 0 : index
    %69 = vector.load %arg1[%c4, %c0_58, %c0_59] : memref<8x8x128xbf16, #tpu.memory_space<vmem>>, vector<1x8x128xbf16>
    %70 = vector.shape_cast %69 : vector<1x8x128xbf16> to vector<8x128xbf16>
    %cst_60 = arith.constant dense<0.000000e+00> : vector<8x128xf32>
    %71 = tpu.matmul %70, %10, %cst_60 {dimension_numbers = #tpu.dot_dimension_numbers<[1], [0], [0], [1], [0, 0, 1, 1], [], []>} : vector<8x128xbf16>, vector<128x128xbf16>, vector<8x128xf32> -> vector<8x128xf32>
    %72 = vector.broadcast %11 : vector<1x128xf32> to vector<8x128xf32>
    %73 = arith.addf %71, %72 : vector<8x128xf32>
    %c4_61 = arith.constant 4 : index
    %c0_62 = arith.constant 0 : index
    %c0_63 = arith.constant 0 : index
    %74 = vector.load %arg13[%c4_61, %c0_62, %c0_63] : memref<8x8x128xf32, #tpu.memory_space<vmem>>, vector<1x8x128xf32>
    %75 = vector.shape_cast %74 : vector<1x8x128xf32> to vector<8x128xf32>
    %76 = vector.shape_cast %73 : vector<8x128xf32> to vector<1x8x128xf32>
    tpu.vector_store %arg13[%c4_61, %c0_62, %c0_63], %76 {strides = array<i32>} : memref<8x8x128xf32, #tpu.memory_space<vmem>>, vector<1x8x128xf32>,
    %c4_64 = arith.constant 4 : index
    %c0_65 = arith.constant 0 : index
    %c0_66 = arith.constant 0 : index
    %77 = vector.load %arg12[%c4_64, %c0_65, %c0_66] : memref<8x8x128xf32, #tpu.memory_space<vmem>>, vector<1x8x128xf32>
    %78 = vector.shape_cast %77 : vector<1x8x128xf32> to vector<8x128xf32>
    %79 = arith.truncf %68 : vector<8x128xf32> to vector<8x128xbf16>
    %cst_67 = arith.constant dense<0.000000e+00> : vector<8x128xf32>
    %80 = tpu.matmul %79, %9, %cst_67 {dimension_numbers = #tpu.dot_dimension_numbers<[1], [0], [0], [1], [0, 0, 1, 1], [], []>} : vector<8x128xbf16>, vector<128x128xbf16>, vector<8x128xf32> -> vector<8x128xf32>
    %81 = arith.addf %78, %80 : vector<8x128xf32>
    %82 = math.tanh %81 : vector<8x128xf32>
    %c5 = arith.constant 5 : index
    %c0_68 = arith.constant 0 : index
    %c0_69 = arith.constant 0 : index
    %83 = vector.load %arg1[%c5, %c0_68, %c0_69] : memref<8x8x128xbf16, #tpu.memory_space<vmem>>, vector<1x8x128xbf16>
    %84 = vector.shape_cast %83 : vector<1x8x128xbf16> to vector<8x128xbf16>
    %cst_70 = arith.constant dense<0.000000e+00> : vector<8x128xf32>
    %85 = tpu.matmul %84, %10, %cst_70 {dimension_numbers = #tpu.dot_dimension_numbers<[1], [0], [0], [1], [0, 0, 1, 1], [], []>} : vector<8x128xbf16>, vector<128x128xbf16>, vector<8x128xf32> -> vector<8x128xf32>
    %86 = vector.broadcast %11 : vector<1x128xf32> to vector<8x128xf32>
    %87 = arith.addf %85, %86 : vector<8x128xf32>
    %c5_71 = arith.constant 5 : index
    %c0_72 = arith.constant 0 : index
    %c0_73 = arith.constant 0 : index
    %88 = vector.load %arg13[%c5_71, %c0_72, %c0_73] : memref<8x8x128xf32, #tpu.memory_space<vmem>>, vector<1x8x128xf32>
    %89 = vector.shape_cast %88 : vector<1x8x128xf32> to vector<8x128xf32>
    %90 = vector.shape_cast %87 : vector<8x128xf32> to vector<1x8x128xf32>
    tpu.vector_store %arg13[%c5_71, %c0_72, %c0_73], %90 {strides = array<i32>} : memref<8x8x128xf32, #tpu.memory_space<vmem>>, vector<1x8x128xf32>,
    %c5_74 = arith.constant 5 : index
    %c0_75 = arith.constant 0 : index
    %c0_76 = arith.constant 0 : index
    %91 = vector.load %arg12[%c5_74, %c0_75, %c0_76] : memref<8x8x128xf32, #tpu.memory_space<vmem>>, vector<1x8x128xf32>
    %92 = vector.shape_cast %91 : vector<1x8x128xf32> to vector<8x128xf32>
    %93 = arith.truncf %82 : vector<8x128xf32> to vector<8x128xbf16>
    %cst_77 = arith.constant dense<0.000000e+00> : vector<8x128xf32>
    %94 = tpu.matmul %93, %9, %cst_77 {dimension_numbers = #tpu.dot_dimension_numbers<[1], [0], [0], [1], [0, 0, 1, 1], [], []>} : vector<8x128xbf16>, vector<128x128xbf16>, vector<8x128xf32> -> vector<8x128xf32>
    %95 = arith.addf %92, %94 : vector<8x128xf32>
    %96 = math.tanh %95 : vector<8x128xf32>
    %c6 = arith.constant 6 : index
    %c0_78 = arith.constant 0 : index
    %c0_79 = arith.constant 0 : index
    %97 = vector.load %arg1[%c6, %c0_78, %c0_79] : memref<8x8x128xbf16, #tpu.memory_space<vmem>>, vector<1x8x128xbf16>
    %98 = vector.shape_cast %97 : vector<1x8x128xbf16> to vector<8x128xbf16>
    %cst_80 = arith.constant dense<0.000000e+00> : vector<8x128xf32>
    %99 = tpu.matmul %98, %10, %cst_80 {dimension_numbers = #tpu.dot_dimension_numbers<[1], [0], [0], [1], [0, 0, 1, 1], [], []>} : vector<8x128xbf16>, vector<128x128xbf16>, vector<8x128xf32> -> vector<8x128xf32>
    %100 = vector.broadcast %11 : vector<1x128xf32> to vector<8x128xf32>
    %101 = arith.addf %99, %100 : vector<8x128xf32>
    %c6_81 = arith.constant 6 : index
    %c0_82 = arith.constant 0 : index
    %c0_83 = arith.constant 0 : index
    %102 = vector.load %arg13[%c6_81, %c0_82, %c0_83] : memref<8x8x128xf32, #tpu.memory_space<vmem>>, vector<1x8x128xf32>
    %103 = vector.shape_cast %102 : vector<1x8x128xf32> to vector<8x128xf32>
    %104 = vector.shape_cast %101 : vector<8x128xf32> to vector<1x8x128xf32>
    tpu.vector_store %arg13[%c6_81, %c0_82, %c0_83], %104 {strides = array<i32>} : memref<8x8x128xf32, #tpu.memory_space<vmem>>, vector<1x8x128xf32>,
    %c6_84 = arith.constant 6 : index
    %c0_85 = arith.constant 0 : index
    %c0_86 = arith.constant 0 : index
    %105 = vector.load %arg12[%c6_84, %c0_85, %c0_86] : memref<8x8x128xf32, #tpu.memory_space<vmem>>, vector<1x8x128xf32>
    %106 = vector.shape_cast %105 : vector<1x8x128xf32> to vector<8x128xf32>
    %107 = arith.truncf %96 : vector<8x128xf32> to vector<8x128xbf16>
    %cst_87 = arith.constant dense<0.000000e+00> : vector<8x128xf32>
    %108 = tpu.matmul %107, %9, %cst_87 {dimension_numbers = #tpu.dot_dimension_numbers<[1], [0], [0], [1], [0, 0, 1, 1], [], []>} : vector<8x128xbf16>, vector<128x128xbf16>, vector<8x128xf32> -> vector<8x128xf32>
    %109 = arith.addf %106, %108 : vector<8x128xf32>
    %110 = math.tanh %109 : vector<8x128xf32>
    %c7 = arith.constant 7 : index
    %c0_88 = arith.constant 0 : index
    %c0_89 = arith.constant 0 : index
    %111 = vector.load %arg1[%c7, %c0_88, %c0_89] : memref<8x8x128xbf16, #tpu.memory_space<vmem>>, vector<1x8x128xbf16>
    %112 = vector.shape_cast %111 : vector<1x8x128xbf16> to vector<8x128xbf16>
    %cst_90 = arith.constant dense<0.000000e+00> : vector<8x128xf32>
    %113 = tpu.matmul %112, %10, %cst_90 {dimension_numbers = #tpu.dot_dimension_numbers<[1], [0], [0], [1], [0, 0, 1, 1], [], []>} : vector<8x128xbf16>, vector<128x128xbf16>, vector<8x128xf32> -> vector<8x128xf32>
    %114 = vector.broadcast %11 : vector<1x128xf32> to vector<8x128xf32>
    %115 = arith.addf %113, %114 : vector<8x128xf32>
    %c7_91 = arith.constant 7 : index
    %c0_92 = arith.constant 0 : index
    %c0_93 = arith.constant 0 : index
    %116 = vector.load %arg13[%c7_91, %c0_92, %c0_93] : memref<8x8x128xf32, #tpu.memory_space<vmem>>, vector<1x8x128xf32>
    %117 = vector.shape_cast %116 : vector<1x8x128xf32> to vector<8x128xf32>
    %118 = vector.shape_cast %115 : vector<8x128xf32> to vector<1x8x128xf32>
    tpu.vector_store %arg13[%c7_91, %c0_92, %c0_93], %118 {strides = array<i32>} : memref<8x8x128xf32, #tpu.memory_space<vmem>>, vector<1x8x128xf32>,
    %c7_94 = arith.constant 7 : index
    %c0_95 = arith.constant 0 : index
    %c0_96 = arith.constant 0 : index
    %119 = vector.load %arg12[%c7_94, %c0_95, %c0_96] : memref<8x8x128xf32, #tpu.memory_space<vmem>>, vector<1x8x128xf32>
    %120 = vector.shape_cast %119 : vector<1x8x128xf32> to vector<8x128xf32>
    %121 = arith.truncf %110 : vector<8x128xf32> to vector<8x128xbf16>
    %cst_97 = arith.constant dense<0.000000e+00> : vector<8x128xf32>
    %122 = tpu.matmul %121, %9, %cst_97 {dimension_numbers = #tpu.dot_dimension_numbers<[1], [0], [0], [1], [0, 0, 1, 1], [], []>} : vector<8x128xbf16>, vector<128x128xbf16>, vector<8x128xf32> -> vector<8x128xf32>
    %123 = arith.addf %120, %122 : vector<8x128xf32>
    %124 = math.tanh %123 : vector<8x128xf32>
    %c0_98 = arith.constant 0 : index
    %c0_99 = arith.constant 0 : index
    %125 = vector.load %arg7[%c0_98, %c0_99] : memref<128x128xbf16, #tpu.memory_space<vmem>>, vector<128x128xbf16>
    %c0_100 = arith.constant 0 : index
    %c0_101 = arith.constant 0 : index
    %126 = vector.load %arg9[%c0_100, %c0_101] : memref<128x128xbf16, #tpu.memory_space<vmem>>, vector<128x128xbf16>
    %c0_102 = arith.constant 0 : index
    %c0_103 = arith.constant 0 : index
    %127 = vector.load %arg10[%c0_102, %c0_103] : memref<1x128xf32, #tpu.memory_space<vmem>>, vector<1x128xf32>
    %c0_104 = arith.constant 0 : index
    %c0_105 = arith.constant 0 : index
    %c0_106 = arith.constant 0 : index
    %128 = vector.load %arg13[%c0_104, %c0_105, %c0_106] : memref<8x8x128xf32, #tpu.memory_space<vmem>>, vector<1x8x128xf32>
    %129 = vector.shape_cast %128 : vector<1x8x128xf32> to vector<8x128xf32>
    %130 = arith.truncf %124 : vector<8x128xf32> to vector<8x128xbf16>
    %cst_107 = arith.constant dense<0.000000e+00> : vector<8x128xf32>
    %131 = tpu.matmul %130, %125, %cst_107 {dimension_numbers = #tpu.dot_dimension_numbers<[1], [0], [0], [1], [0, 0, 1, 1], [], []>} : vector<8x128xbf16>, vector<128x128xbf16>, vector<8x128xf32> -> vector<8x128xf32>
    %132 = arith.addf %129, %131 : vector<8x128xf32>
    %133 = math.tanh %132 : vector<8x128xf32>
    %134 = arith.truncf %133 : vector<8x128xf32> to vector<8x128xbf16>
    %cst_108 = arith.constant dense<0.000000e+00> : vector<8x128xf32>
    %135 = tpu.matmul %134, %126, %cst_108 {dimension_numbers = #tpu.dot_dimension_numbers<[1], [0], [0], [1], [0, 0, 1, 1], [], []>} : vector<8x128xbf16>, vector<128x128xbf16>, vector<8x128xf32> -> vector<8x128xf32>
    %136 = vector.broadcast %127 : vector<1x128xf32> to vector<8x128xf32>
    %137 = arith.addf %135, %136 : vector<8x128xf32>
    %c0_109 = arith.constant 0 : index
    %c0_110 = arith.constant 0 : index
    %c0_111 = arith.constant 0 : index
    %138 = vector.load %arg11[%c0_109, %c0_110, %c0_111] : memref<8x8x128xf32, #tpu.memory_space<vmem>>, vector<1x8x128xf32>
    %139 = vector.shape_cast %138 : vector<1x8x128xf32> to vector<8x128xf32>
    %140 = vector.shape_cast %137 : vector<8x128xf32> to vector<1x8x128xf32>
    tpu.vector_store %arg11[%c0_109, %c0_110, %c0_111], %140 {strides = array<i32>} : memref<8x8x128xf32, #tpu.memory_space<vmem>>, vector<1x8x128xf32>,
    %c1_112 = arith.constant 1 : index
    %c0_113 = arith.constant 0 : index
    %c0_114 = arith.constant 0 : index
    %141 = vector.load %arg13[%c1_112, %c0_113, %c0_114] : memref<8x8x128xf32, #tpu.memory_space<vmem>>, vector<1x8x128xf32>
    %142 = vector.shape_cast %141 : vector<1x8x128xf32> to vector<8x128xf32>
    %143 = arith.truncf %133 : vector<8x128xf32> to vector<8x128xbf16>
    %cst_115 = arith.constant dense<0.000000e+00> : vector<8x128xf32>
    %144 = tpu.matmul %143, %125, %cst_115 {dimension_numbers = #tpu.dot_dimension_numbers<[1], [0], [0], [1], [0, 0, 1, 1], [], []>} : vector<8x128xbf16>, vector<128x128xbf16>, vector<8x128xf32> -> vector<8x128xf32>
    %145 = arith.addf %142, %144 : vector<8x128xf32>
    %146 = math.tanh %145 : vector<8x128xf32>
    %147 = arith.truncf %146 : vector<8x128xf32> to vector<8x128xbf16>
    %cst_116 = arith.constant dense<0.000000e+00> : vector<8x128xf32>
    %148 = tpu.matmul %147, %126, %cst_116 {dimension_numbers = #tpu.dot_dimension_numbers<[1], [0], [0], [1], [0, 0, 1, 1], [], []>} : vector<8x128xbf16>, vector<128x128xbf16>, vector<8x128xf32> -> vector<8x128xf32>
    %149 = vector.broadcast %127 : vector<1x128xf32> to vector<8x128xf32>
    %150 = arith.addf %148, %149 : vector<8x128xf32>
    %c1_117 = arith.constant 1 : index
    %c0_118 = arith.constant 0 : index
    %c0_119 = arith.constant 0 : index
    %151 = vector.load %arg11[%c1_117, %c0_118, %c0_119] : memref<8x8x128xf32, #tpu.memory_space<vmem>>, vector<1x8x128xf32>
    %152 = vector.shape_cast %151 : vector<1x8x128xf32> to vector<8x128xf32>
    %153 = vector.shape_cast %150 : vector<8x128xf32> to vector<1x8x128xf32>
    tpu.vector_store %arg11[%c1_117, %c0_118, %c0_119], %153 {strides = array<i32>} : memref<8x8x128xf32, #tpu.memory_space<vmem>>, vector<1x8x128xf32>,
    %c2_120 = arith.constant 2 : index
    %c0_121 = arith.constant 0 : index
    %c0_122 = arith.constant 0 : index
    %154 = vector.load %arg13[%c2_120, %c0_121, %c0_122] : memref<8x8x128xf32, #tpu.memory_space<vmem>>, vector<1x8x128xf32>
    %155 = vector.shape_cast %154 : vector<1x8x128xf32> to vector<8x128xf32>
    %156 = arith.truncf %146 : vector<8x128xf32> to vector<8x128xbf16>
    %cst_123 = arith.constant dense<0.000000e+00> : vector<8x128xf32>
    %157 = tpu.matmul %156, %125, %cst_123 {dimension_numbers = #tpu.dot_dimension_numbers<[1], [0], [0], [1], [0, 0, 1, 1], [], []>} : vector<8x128xbf16>, vector<128x128xbf16>, vector<8x128xf32> -> vector<8x128xf32>
    %158 = arith.addf %155, %157 : vector<8x128xf32>
    %159 = math.tanh %158 : vector<8x128xf32>
    %160 = arith.truncf %159 : vector<8x128xf32> to vector<8x128xbf16>
    %cst_124 = arith.constant dense<0.000000e+00> : vector<8x128xf32>
    %161 = tpu.matmul %160, %126, %cst_124 {dimension_numbers = #tpu.dot_dimension_numbers<[1], [0], [0], [1], [0, 0, 1, 1], [], []>} : vector<8x128xbf16>, vector<128x128xbf16>, vector<8x128xf32> -> vector<8x128xf32>
    %162 = vector.broadcast %127 : vector<1x128xf32> to vector<8x128xf32>
    %163 = arith.addf %161, %162 : vector<8x128xf32>
    %c2_125 = arith.constant 2 : index
    %c0_126 = arith.constant 0 : index
    %c0_127 = arith.constant 0 : index
    %164 = vector.load %arg11[%c2_125, %c0_126, %c0_127] : memref<8x8x128xf32, #tpu.memory_space<vmem>>, vector<1x8x128xf32>
    %165 = vector.shape_cast %164 : vector<1x8x128xf32> to vector<8x128xf32>
    %166 = vector.shape_cast %163 : vector<8x128xf32> to vector<1x8x128xf32>
    tpu.vector_store %arg11[%c2_125, %c0_126, %c0_127], %166 {strides = array<i32>} : memref<8x8x128xf32, #tpu.memory_space<vmem>>, vector<1x8x128xf32>,
    %c3_128 = arith.constant 3 : index
    %c0_129 = arith.constant 0 : index
    %c0_130 = arith.constant 0 : index
    %167 = vector.load %arg13[%c3_128, %c0_129, %c0_130] : memref<8x8x128xf32, #tpu.memory_space<vmem>>, vector<1x8x128xf32>
    %168 = vector.shape_cast %167 : vector<1x8x128xf32> to vector<8x128xf32>
    %169 = arith.truncf %159 : vector<8x128xf32> to vector<8x128xbf16>
    %cst_131 = arith.constant dense<0.000000e+00> : vector<8x128xf32>
    %170 = tpu.matmul %169, %125, %cst_131 {dimension_numbers = #tpu.dot_dimension_numbers<[1], [0], [0], [1], [0, 0, 1, 1], [], []>} : vector<8x128xbf16>, vector<128x128xbf16>, vector<8x128xf32> -> vector<8x128xf32>
    %171 = arith.addf %168, %170 : vector<8x128xf32>
    %172 = math.tanh %171 : vector<8x128xf32>
    %173 = arith.truncf %172 : vector<8x128xf32> to vector<8x128xbf16>
    %cst_132 = arith.constant dense<0.000000e+00> : vector<8x128xf32>
    %174 = tpu.matmul %173, %126, %cst_132 {dimension_numbers = #tpu.dot_dimension_numbers<[1], [0], [0], [1], [0, 0, 1, 1], [], []>} : vector<8x128xbf16>, vector<128x128xbf16>, vector<8x128xf32> -> vector<8x128xf32>
    %175 = vector.broadcast %127 : vector<1x128xf32> to vector<8x128xf32>
    %176 = arith.addf %174, %175 : vector<8x128xf32>
    %c3_133 = arith.constant 3 : index
    %c0_134 = arith.constant 0 : index
    %c0_135 = arith.constant 0 : index
    %177 = vector.load %arg11[%c3_133, %c0_134, %c0_135] : memref<8x8x128xf32, #tpu.memory_space<vmem>>, vector<1x8x128xf32>
    %178 = vector.shape_cast %177 : vector<1x8x128xf32> to vector<8x128xf32>
    %179 = vector.shape_cast %176 : vector<8x128xf32> to vector<1x8x128xf32>
    tpu.vector_store %arg11[%c3_133, %c0_134, %c0_135], %179 {strides = array<i32>} : memref<8x8x128xf32, #tpu.memory_space<vmem>>, vector<1x8x128xf32>,
    %c4_136 = arith.constant 4 : index
    %c0_137 = arith.constant 0 : index
    %c0_138 = arith.constant 0 : index
    %180 = vector.load %arg13[%c4_136, %c0_137, %c0_138] : memref<8x8x128xf32, #tpu.memory_space<vmem>>, vector<1x8x128xf32>
    %181 = vector.shape_cast %180 : vector<1x8x128xf32> to vector<8x128xf32>
    %182 = arith.truncf %172 : vector<8x128xf32> to vector<8x128xbf16>
    %cst_139 = arith.constant dense<0.000000e+00> : vector<8x128xf32>
    %183 = tpu.matmul %182, %125, %cst_139 {dimension_numbers = #tpu.dot_dimension_numbers<[1], [0], [0], [1], [0, 0, 1, 1], [], []>} : vector<8x128xbf16>, vector<128x128xbf16>, vector<8x128xf32> -> vector<8x128xf32>
    %184 = arith.addf %181, %183 : vector<8x128xf32>
    %185 = math.tanh %184 : vector<8x128xf32>
    %186 = arith.truncf %185 : vector<8x128xf32> to vector<8x128xbf16>
    %cst_140 = arith.constant dense<0.000000e+00> : vector<8x128xf32>
    %187 = tpu.matmul %186, %126, %cst_140 {dimension_numbers = #tpu.dot_dimension_numbers<[1], [0], [0], [1], [0, 0, 1, 1], [], []>} : vector<8x128xbf16>, vector<128x128xbf16>, vector<8x128xf32> -> vector<8x128xf32>
    %188 = vector.broadcast %127 : vector<1x128xf32> to vector<8x128xf32>
    %189 = arith.addf %187, %188 : vector<8x128xf32>
    %c4_141 = arith.constant 4 : index
    %c0_142 = arith.constant 0 : index
    %c0_143 = arith.constant 0 : index
    %190 = vector.load %arg11[%c4_141, %c0_142, %c0_143] : memref<8x8x128xf32, #tpu.memory_space<vmem>>, vector<1x8x128xf32>
    %191 = vector.shape_cast %190 : vector<1x8x128xf32> to vector<8x128xf32>
    %192 = vector.shape_cast %189 : vector<8x128xf32> to vector<1x8x128xf32>
    tpu.vector_store %arg11[%c4_141, %c0_142, %c0_143], %192 {strides = array<i32>} : memref<8x8x128xf32, #tpu.memory_space<vmem>>, vector<1x8x128xf32>,
    %c5_144 = arith.constant 5 : index
    %c0_145 = arith.constant 0 : index
    %c0_146 = arith.constant 0 : index
    %193 = vector.load %arg13[%c5_144, %c0_145, %c0_146] : memref<8x8x128xf32, #tpu.memory_space<vmem>>, vector<1x8x128xf32>
    %194 = vector.shape_cast %193 : vector<1x8x128xf32> to vector<8x128xf32>
    %195 = arith.truncf %185 : vector<8x128xf32> to vector<8x128xbf16>
    %cst_147 = arith.constant dense<0.000000e+00> : vector<8x128xf32>
    %196 = tpu.matmul %195, %125, %cst_147 {dimension_numbers = #tpu.dot_dimension_numbers<[1], [0], [0], [1], [0, 0, 1, 1], [], []>} : vector<8x128xbf16>, vector<128x128xbf16>, vector<8x128xf32> -> vector<8x128xf32>
    %197 = arith.addf %194, %196 : vector<8x128xf32>
    %198 = math.tanh %197 : vector<8x128xf32>
    %199 = arith.truncf %198 : vector<8x128xf32> to vector<8x128xbf16>
    %cst_148 = arith.constant dense<0.000000e+00> : vector<8x128xf32>
    %200 = tpu.matmul %199, %126, %cst_148 {dimension_numbers = #tpu.dot_dimension_numbers<[1], [0], [0], [1], [0, 0, 1, 1], [], []>} : vector<8x128xbf16>, vector<128x128xbf16>, vector<8x128xf32> -> vector<8x128xf32>
    %201 = vector.broadcast %127 : vector<1x128xf32> to vector<8x128xf32>
    %202 = arith.addf %200, %201 : vector<8x128xf32>
    %c5_149 = arith.constant 5 : index
    %c0_150 = arith.constant 0 : index
    %c0_151 = arith.constant 0 : index
    %203 = vector.load %arg11[%c5_149, %c0_150, %c0_151] : memref<8x8x128xf32, #tpu.memory_space<vmem>>, vector<1x8x128xf32>
    %204 = vector.shape_cast %203 : vector<1x8x128xf32> to vector<8x128xf32>
    %205 = vector.shape_cast %202 : vector<8x128xf32> to vector<1x8x128xf32>
    tpu.vector_store %arg11[%c5_149, %c0_150, %c0_151], %205 {strides = array<i32>} : memref<8x8x128xf32, #tpu.memory_space<vmem>>, vector<1x8x128xf32>,
    %c6_152 = arith.constant 6 : index
    %c0_153 = arith.constant 0 : index
    %c0_154 = arith.constant 0 : index
    %206 = vector.load %arg13[%c6_152, %c0_153, %c0_154] : memref<8x8x128xf32, #tpu.memory_space<vmem>>, vector<1x8x128xf32>
    %207 = vector.shape_cast %206 : vector<1x8x128xf32> to vector<8x128xf32>
    %208 = arith.truncf %198 : vector<8x128xf32> to vector<8x128xbf16>
    %cst_155 = arith.constant dense<0.000000e+00> : vector<8x128xf32>
    %209 = tpu.matmul %208, %125, %cst_155 {dimension_numbers = #tpu.dot_dimension_numbers<[1], [0], [0], [1], [0, 0, 1, 1], [], []>} : vector<8x128xbf16>, vector<128x128xbf16>, vector<8x128xf32> -> vector<8x128xf32>
    %210 = arith.addf %207, %209 : vector<8x128xf32>
    %211 = math.tanh %210 : vector<8x128xf32>
    %212 = arith.truncf %211 : vector<8x128xf32> to vector<8x128xbf16>
    %cst_156 = arith.constant dense<0.000000e+00> : vector<8x128xf32>
    %213 = tpu.matmul %212, %126, %cst_156 {dimension_numbers = #tpu.dot_dimension_numbers<[1], [0], [0], [1], [0, 0, 1, 1], [], []>} : vector<8x128xbf16>, vector<128x128xbf16>, vector<8x128xf32> -> vector<8x128xf32>
    %214 = vector.broadcast %127 : vector<1x128xf32> to vector<8x128xf32>
    %215 = arith.addf %213, %214 : vector<8x128xf32>
    %c6_157 = arith.constant 6 : index
    %c0_158 = arith.constant 0 : index
    %c0_159 = arith.constant 0 : index
    %216 = vector.load %arg11[%c6_157, %c0_158, %c0_159] : memref<8x8x128xf32, #tpu.memory_space<vmem>>, vector<1x8x128xf32>
    %217 = vector.shape_cast %216 : vector<1x8x128xf32> to vector<8x128xf32>
    %218 = vector.shape_cast %215 : vector<8x128xf32> to vector<1x8x128xf32>
    tpu.vector_store %arg11[%c6_157, %c0_158, %c0_159], %218 {strides = array<i32>} : memref<8x8x128xf32, #tpu.memory_space<vmem>>, vector<1x8x128xf32>,
    %c7_160 = arith.constant 7 : index
    %c0_161 = arith.constant 0 : index
    %c0_162 = arith.constant 0 : index
    %219 = vector.load %arg13[%c7_160, %c0_161, %c0_162] : memref<8x8x128xf32, #tpu.memory_space<vmem>>, vector<1x8x128xf32>
    %220 = vector.shape_cast %219 : vector<1x8x128xf32> to vector<8x128xf32>
    %221 = arith.truncf %211 : vector<8x128xf32> to vector<8x128xbf16>
    %cst_163 = arith.constant dense<0.000000e+00> : vector<8x128xf32>
    %222 = tpu.matmul %221, %125, %cst_163 {dimension_numbers = #tpu.dot_dimension_numbers<[1], [0], [0], [1], [0, 0, 1, 1], [], []>} : vector<8x128xbf16>, vector<128x128xbf16>, vector<8x128xf32> -> vector<8x128xf32>
    %223 = arith.addf %220, %222 : vector<8x128xf32>
    %224 = math.tanh %223 : vector<8x128xf32>
    %225 = arith.truncf %224 : vector<8x128xf32> to vector<8x128xbf16>
    %cst_164 = arith.constant dense<0.000000e+00> : vector<8x128xf32>
    %226 = tpu.matmul %225, %126, %cst_164 {dimension_numbers = #tpu.dot_dimension_numbers<[1], [0], [0], [1], [0, 0, 1, 1], [], []>} : vector<8x128xbf16>, vector<128x128xbf16>, vector<8x128xf32> -> vector<8x128xf32>
    %227 = vector.broadcast %127 : vector<1x128xf32> to vector<8x128xf32>
    %228 = arith.addf %226, %227 : vector<8x128xf32>
    %c7_165 = arith.constant 7 : index
    %c0_166 = arith.constant 0 : index
    %c0_167 = arith.constant 0 : index
    %229 = vector.load %arg11[%c7_165, %c0_166, %c0_167] : memref<8x8x128xf32, #tpu.memory_space<vmem>>, vector<1x8x128xf32>
    %230 = vector.shape_cast %229 : vector<1x8x128xf32> to vector<8x128xf32>
    %231 = vector.shape_cast %228 : vector<8x128xf32> to vector<1x8x128xf32>
    tpu.vector_store %arg11[%c7_165, %c0_166, %c0_167], %231 {strides = array<i32>} : memref<8x8x128xf32, #tpu.memory_space<vmem>>, vector<1x8x128xf32>,
    return
  }
}

</mosaic_0001>

<llo_original>
// kernel: seq2seq_forward.1
$region0: #{seq2seq_forward.1}
  #allocation0 [shape = 'u32[]', space=smem, size = 0x4, offset = 0x4, fixed_abs, tag = 'smem constant byte address 0x4 - core index']
  #allocation1 [shape = 'u32[72,128]{1,0:T(1,128)}', space=vmem, size = 0x9000, scoped, tag = 'internal scratch']
  #allocation2 [shape = 'f32[8,8,128]{2,1,0:T(8,128)}', space=vmem, size = 0x8000, scoped, tag = 'scratch operand']
  #allocation3 [shape = 'f32[8,8,128]{2,1,0:T(8,128)}', space=vmem, size = 0x8000, scoped, tag = 'scratch operand']
  %s0 = inlined_call_operand.vmem [shape: bf16[8,8,128], index: 0, kind: input, shape index: {}]
  %s1 = inlined_call_operand.vmem [shape: bf16[8,8,128], index: 1, kind: input, shape index: {}]
  %s2 = inlined_call_operand.vmem [shape: f32[8,128], index: 2, kind: input, shape index: {}]
  %s3 = inlined_call_operand.vmem [shape: bf16[128,128], index: 3, kind: input, shape index: {}]
  %s4 = inlined_call_operand.vmem [shape: bf16[128,128], index: 4, kind: input, shape index: {}]
  %s5 = inlined_call_operand.vmem [shape: f32[1,128], index: 5, kind: input, shape index: {}]
  %s6 = inlined_call_operand.vmem [shape: bf16[128,128], index: 6, kind: input, shape index: {}]
  %s7 = inlined_call_operand.vmem [shape: bf16[128,128], index: 7, kind: input, shape index: {}]
  %s8 = inlined_call_operand.vmem [shape: f32[1,128], index: 8, kind: input, shape index: {}]
  %s9 = inlined_call_operand.hbm [shape: bf16[128,128], index: 9, kind: input, shape index: {}]
  %s10 = inlined_call_operand.vmem [shape: f32[1,128], index: 10, kind: input, shape index: {}]
  %s11 = inlined_call_operand.vmem [shape: f32[8,8,128], index: 11, kind: output, shape index: {}]
  %s12 = sld [smem:[#allocation0]]
  $region58: #{seq2seq_forward.1} parent=0
    _
  %s14 = ssub.s32 1, %s12
  %s15 = scalar_select 0, %s14, %s12
  $region1: #{seq2seq_forward.1} parent=0
    #allocation4 [shape = 'u8[32768]{0}', space=vmem, size = 0x8000, scoped, tag = 'input window, operand 9, single buffered']
    #allocation5 [shape = 's32[1]{0}', space=sflag, size = 0x4, scoped, tag = 'scoped memory for seq2seq_forward.1']
    %16 = vsyncpa [#allocation5], 0
    // Predicated region
    $region2: #{seq2seq_forward.1} parent=1 // pred_check
      _
    $region3: #{seq2seq_forward.1} parent=1 // pred_check_branch
      %18 = sbr.rel (0) target = $region5
    $region4: #{seq2seq_forward.1} parent=1 // pred_region
      _
    $region5: #{seq2seq_forward.1} parent=1 // pred_fallthru
      _
    // Predicated region
    $region6: #{seq2seq_forward.1} parent=1 // pred_check
      _
    $region7: #{seq2seq_forward.1} parent=1 // pred_check_branch
      %20 = sbr.rel (0) target = $region9
    $region8: #{seq2seq_forward.1} parent=1 // pred_region
      _
    $region9: #{seq2seq_forward.1} parent=1 // pred_fallthru
      _
    // Predicated region
    $region10: #{seq2seq_forward.1} parent=1 // pred_check
      _
    $region11: #{seq2seq_forward.1} parent=1 // pred_check_branch
      %22 = sbr.rel (0) target = $region13
    $region12: #{seq2seq_forward.1} parent=1 // pred_region
      _
    $region13: #{seq2seq_forward.1} parent=1 // pred_fallthru
      _
    // Predicated region
    $region14: #{seq2seq_forward.1} parent=1 // pred_check
      _
    $region15: #{seq2seq_forward.1} parent=1 // pred_check_branch
      %24 = sbr.rel (0) target = $region17
    $region16: #{seq2seq_forward.1} parent=1 // pred_region
      _
    $region17: #{seq2seq_forward.1} parent=1 // pred_fallthru
      _
    // Predicated region
    $region18: #{seq2seq_forward.1} parent=1 // pred_check
      _
    $region19: #{seq2seq_forward.1} parent=1 // pred_check_branch
      %26 = sbr.rel (0) target = $region21
    $region20: #{seq2seq_forward.1} parent=1 // pred_region
      _
    $region21: #{seq2seq_forward.1} parent=1 // pred_fallthru
      _
    // Predicated region
    $region22: #{seq2seq_forward.1} parent=1 // pred_check
      _
    $region23: #{seq2seq_forward.1} parent=1 // pred_check_branch
      %28 = sbr.rel (0) target = $region25
    $region24: #{seq2seq_forward.1} parent=1 // pred_region
      _
    $region25: #{seq2seq_forward.1} parent=1 // pred_fallthru
      _
    // Predicated region
    $region26: #{seq2seq_forward.1} parent=1 // pred_check
      _
    $region27: #{seq2seq_forward.1} parent=1 // pred_check_branch
      %30 = sbr.rel (0) target = $region29
    $region28: #{seq2seq_forward.1} parent=1 // pred_region
      _
    $region29: #{seq2seq_forward.1} parent=1 // pred_fallthru
      _
    // Predicated region
    $region30: #{seq2seq_forward.1} parent=1 // pred_check
      _
    $region31: #{seq2seq_forward.1} parent=1 // pred_check_branch
      %32 = sbr.rel (0) target = $region33
    $region32: #{seq2seq_forward.1} parent=1 // pred_region
      _
    $region33: #{seq2seq_forward.1} parent=1 // pred_fallthru
      _
    // Predicated region
    $region34: #{seq2seq_forward.1} parent=1 // pred_check
      _
    $region35: #{seq2seq_forward.1} parent=1 // pred_check_branch
      %34 = sbr.rel (0) target = $region37
    $region36: #{seq2seq_forward.1} parent=1 // pred_region
      _
    $region37: #{seq2seq_forward.1} parent=1 // pred_fallthru
      _
    // Predicated region
    $region38: #{seq2seq_forward.1} parent=1 // pred_check
      _
    $region39: #{seq2seq_forward.1} parent=1 // pred_check_branch
      %36 = sbr.rel (0) target = $region41
    $region40: #{seq2seq_forward.1} parent=1 // pred_region
      %38 = vsyncadd [#allocation5], 0
      %s39 = sshll.u32 %s9, 4
      %s40 = int_to_ptr.hbm [resolvable:$true] %s39
      %s41 = sshll.u32 [#allocation4], 4
      %s42 = int_to_ptr.vmem [resolvable:$true] %s41
      %47 = dma.hbm_to_vmem [thread:$0]  %s40, 1024, %s42, [#allocation5], 64, 64, 4
    $region41: #{seq2seq_forward.1} parent=1 // pred_fallthru
      _
    // Predicated region
    $region42: #{seq2seq_forward.1} parent=1 // pred_check
      _
    $region43: #{seq2seq_forward.1} parent=1 // pred_check_branch
      %49 = sbr.rel (0) target = $region45
    $region44: #{seq2seq_forward.1} parent=1 // pred_region
      _
    $region45: #{seq2seq_forward.1} parent=1 // pred_fallthru
      _
    // Predicated region
    $region46: #{seq2seq_forward.1} parent=1 // pred_check
      _
    $region47: #{seq2seq_forward.1} parent=1 // pred_check_branch
      %51 = sbr.rel (0) target = $region49
    $region48: #{seq2seq_forward.1} parent=1 // pred_region
      %53 = dma.done [#allocation5], 1024
    $region49: #{seq2seq_forward.1} parent=1 // pred_fallthru
      _
    %v54 = vld [vmem:[%s0] sm:$0xf]
    %v55 = vld [vmem:[%s0 + $0x4] sm:$0xf]
    %v56 = vld [vmem:[%s0 + $0x8] sm:$0xf]
    %v57 = vld [vmem:[%s0 + $0xc] sm:$0xf]
    %v58 = vld [vmem:[%s0 + $0x10] sm:$0xf]
    %v59 = vld [vmem:[%s0 + $0x14] sm:$0xf]
    %v60 = vld [vmem:[%s0 + $0x18] sm:$0xf]
    %v61 = vld [vmem:[%s0 + $0x1c] sm:$0xf]
    %v62 = vld [vmem:[%s3] sm:$0xf]
    %v63 = vld [vmem:[%s3 + $0x4] sm:$0xf]
    %v64 = vld [vmem:[%s3 + $0x8] sm:$0xf]
    %v65 = vld [vmem:[%s3 + $0xc] sm:$0xf]
    %v66 = vld [vmem:[%s3 + $0x10] sm:$0xf]
    %v67 = vld [vmem:[%s3 + $0x14] sm:$0xf]
    %v68 = vld [vmem:[%s3 + $0x18] sm:$0xf]
    %v69 = vld [vmem:[%s3 + $0x1c] sm:$0xf]
    %v70 = vld [vmem:[%s3 + $0x20] sm:$0xf]
    %v71 = vld [vmem:[%s3 + $0x24] sm:$0xf]
    %v72 = vld [vmem:[%s3 + $0x28] sm:$0xf]
    %v73 = vld [vmem:[%s3 + $0x2c] sm:$0xf]
    %v74 = vld [vmem:[%s3 + $0x30] sm:$0xf]
    %v75 = vld [vmem:[%s3 + $0x34] sm:$0xf]
    %v76 = vld [vmem:[%s3 + $0x38] sm:$0xf]
    %v77 = vld [vmem:[%s3 + $0x3c] sm:$0xf]
    %v78 = vld [vmem:[%s5] sm:$0x1]
    %v80 = vperm.slane %v78, 0
    %v90 = vunpack.c.l.b16 %v54
    %v91 = vunpack.c.l.b16 %v55
    %v92 = vunpack.c.l.b16 %v56
    %v93 = vunpack.c.l.b16 %v57
    %v94 = vunpack.c.l.b16 %v58
    %v95 = vunpack.c.l.b16 %v59
    %v96 = vunpack.c.l.b16 %v60
    %v97 = vunpack.c.l.b16 %v61
    %v98 = vpack.c.b16 %v91, %v90
    %v99 = vpack.c.b16 %v93, %v92
    %v100 = vpack.c.b16 %v95, %v94
    %v101 = vpack.c.b16 %v97, %v96
    %v122 = vunpack.c.l.b16 %v62
    %v123 = vunpack.c.l.b16 %v63
    %v124 = vunpack.c.l.b16 %v64
    %v125 = vunpack.c.l.b16 %v65
    %v126 = vunpack.c.l.b16 %v66
    %v127 = vunpack.c.l.b16 %v67
    %v128 = vunpack.c.l.b16 %v68
    %v129 = vunpack.c.l.b16 %v69
    %v130 = vunpack.c.l.b16 %v70
    %v131 = vunpack.c.l.b16 %v71
    %v132 = vunpack.c.l.b16 %v72
    %v133 = vunpack.c.l.b16 %v73
    %v134 = vunpack.c.l.b16 %v74
    %v135 = vunpack.c.l.b16 %v75
    %v136 = vunpack.c.l.b16 %v76
    %v137 = vunpack.c.l.b16 %v77
    %v138 = vpack.c.b16 %v123, %v122
    %v139 = vpack.c.b16 %v125, %v124
    %v140 = vpack.c.b16 %v127, %v126
    %v141 = vpack.c.b16 %v129, %v128
    %v142 = vpack.c.b16 %v131, %v130
    %v143 = vpack.c.b16 %v133, %v132
    %v144 = vpack.c.b16 %v135, %v134
    %v145 = vpack.c.b16 %v137, %v136
    %154 = vmatpush.bf16.msra.mxu0 %v145
    %155 = vmatpush.bf16.msra.mxu0 %v144
    %156 = vmatpush.bf16.msra.mxu0 %v143
    %157 = vmatpush.bf16.msra.mxu0 %v142
    %158 = vmatpush.bf16.msra.mxu0 %v141
    %159 = vmatpush.bf16.msra.mxu0 %v140
    %160 = vmatpush.bf16.msra.mxu0 %v139
    %161 = vmatpush.bf16.msra.mxu0 %v138
    %162 = vmatmul.bf16.gmra.mxu0 %v98
    %v163 = vpop.f32.mrf.mxu0
    %v164 = vadd.f32 %v80, %v163
    %v165 = vpop.f32.mrf.mxu0
    %v166 = vadd.f32 %v80, %v165
    %167 = vmatmul.bf16.gmra.mxu0 %v99
    %v168 = vpop.f32.mrf.mxu0
    %v169 = vadd.f32 %v80, %v168
    %v170 = vpop.f32.mrf.mxu0
    %v171 = vadd.f32 %v80, %v170
    %172 = vmatmul.bf16.gmra.mxu0 %v100
    %v173 = vpop.f32.mrf.mxu0
    %v174 = vadd.f32 %v80, %v173
    %v175 = vpop.f32.mrf.mxu0
    %v176 = vadd.f32 %v80, %v175
    %177 = vmatmul.bf16.gmra.mxu0 %v101
    %v178 = vpop.f32.mrf.mxu0
    %v179 = vadd.f32 %v80, %v178
    %v180 = vpop.f32.mrf.mxu0
    %v181 = vadd.f32 %v80, %v180
    %182 = vdwg.mxu0
    %183 = vst [vmem:[#allocation2] sm:$0xff] %v164
    %184 = vst [vmem:[#allocation2 + $0x8] sm:$0xff] %v166
    %185 = vst [vmem:[#allocation2 + $0x10] sm:$0xff] %v169
    %186 = vst [vmem:[#allocation2 + $0x18] sm:$0xff] %v171
    %187 = vst [vmem:[#allocation2 + $0x20] sm:$0xff] %v174
    %188 = vst [vmem:[#allocation2 + $0x28] sm:$0xff] %v176
    %189 = vst [vmem:[#allocation2 + $0x30] sm:$0xff] %v179
    %190 = vst [vmem:[#allocation2 + $0x38] sm:$0xff] %v181
    %v191 = vld [vmem:[%s4] sm:$0xf]
    %v192 = vld [vmem:[%s4 + $0x4] sm:$0xf]
    %v193 = vld [vmem:[%s4 + $0x8] sm:$0xf]
    %v194 = vld [vmem:[%s4 + $0xc] sm:$0xf]
    %v195 = vld [vmem:[%s4 + $0x10] sm:$0xf]
    %v196 = vld [vmem:[%s4 + $0x14] sm:$0xf]
    %v197 = vld [vmem:[%s4 + $0x18] sm:$0xf]
    %v198 = vld [vmem:[%s4 + $0x1c] sm:$0xf]
    %v199 = vld [vmem:[%s4 + $0x20] sm:$0xf]
    %v200 = vld [vmem:[%s4 + $0x24] sm:$0xf]
    %v201 = vld [vmem:[%s4 + $0x28] sm:$0xf]
    %v202 = vld [vmem:[%s4 + $0x2c] sm:$0xf]
    %v203 = vld [vmem:[%s4 + $0x30] sm:$0xf]
    %v204 = vld [vmem:[%s4 + $0x34] sm:$0xf]
    %v205 = vld [vmem:[%s4 + $0x38] sm:$0xf]
    %v206 = vld [vmem:[%s4 + $0x3c] sm:$0xf]
    %v207 = vld [vmem:[%s6] sm:$0xf]
    %v208 = vld [vmem:[%s6 + $0x4] sm:$0xf]
    %v209 = vld [vmem:[%s6 + $0x8] sm:$0xf]
    %v210 = vld [vmem:[%s6 + $0xc] sm:$0xf]
    %v211 = vld [vmem:[%s6 + $0x10] sm:$0xf]
    %v212 = vld [vmem:[%s6 + $0x14] sm:$0xf]
    %v213 = vld [vmem:[%s6 + $0x18] sm:$0xf]
    %v214 = vld [vmem:[%s6 + $0x1c] sm:$0xf]
    %v215 = vld [vmem:[%s6 + $0x20] sm:$0xf]
    %v216 = vld [vmem:[%s6 + $0x24] sm:$0xf]
    %v217 = vld [vmem:[%s6 + $0x28] sm:$0xf]
    %v218 = vld [vmem:[%s6 + $0x2c] sm:$0xf]
    %v219 = vld [vmem:[%s6 + $0x30] sm:$0xf]
    %v220 = vld [vmem:[%s6 + $0x34] sm:$0xf]
    %v221 = vld [vmem:[%s6 + $0x38] sm:$0xf]
    %v222 = vld [vmem:[%s6 + $0x3c] sm:$0xf]
    %v223 = vld [vmem:[%s8] sm:$0x1]
    %v224 = vld [vmem:[%s2] sm:$0xff]
    %v225 = vld [vmem:[%s1] sm:$0xf]
    %v227 = vperm.slane %v223, 0
    %v245 = vunpack.c.l.b16 %v207
    %v246 = vunpack.c.l.b16 %v208
    %v247 = vunpack.c.l.b16 %v209
    %v248 = vunpack.c.l.b16 %v210
    %v249 = vunpack.c.l.b16 %v211
    %v250 = vunpack.c.l.b16 %v212
    %v251 = vunpack.c.l.b16 %v213
    %v252 = vunpack.c.l.b16 %v214
    %v253 = vunpack.c.l.b16 %v215
    %v254 = vunpack.c.l.b16 %v216
    %v255 = vunpack.c.l.b16 %v217
    %v256 = vunpack.c.l.b16 %v218
    %v257 = vunpack.c.l.b16 %v219
    %v258 = vunpack.c.l.b16 %v220
    %v259 = vunpack.c.l.b16 %v221
    %v260 = vunpack.c.l.b16 %v222
    %v261 = vpack.c.b16 %v246, %v245
    %v262 = vpack.c.b16 %v248, %v247
    %v263 = vpack.c.b16 %v250, %v249
    %v264 = vpack.c.b16 %v252, %v251
    %v265 = vpack.c.b16 %v254, %v253
    %v266 = vpack.c.b16 %v256, %v255
    %v267 = vpack.c.b16 %v258, %v257
    %v268 = vpack.c.b16 %v260, %v259
    %277 = vmatpush.bf16.msra.mxu0 %v268
    %278 = vmatpush.bf16.msra.mxu0 %v267
    %279 = vmatpush.bf16.msra.mxu0 %v266
    %280 = vmatpush.bf16.msra.mxu0 %v265
    %281 = vmatpush.bf16.msra.mxu0 %v264
    %282 = vmatpush.bf16.msra.mxu0 %v263
    %283 = vmatpush.bf16.msra.mxu0 %v262
    %284 = vmatpush.bf16.msra.mxu0 %v261
    %285 = vmatmul.bf16.gmra.mxu0 %v225
    %v286 = vpop.f32.mrf.mxu0
    %v287 = vadd.f32 %v227, %v286
    %v288 = vpop.f32.mrf.mxu0
    %289 = vdwg.mxu0
    %290 = vst [vmem:[#allocation3] sm:$0xff] %v287
    %v291 = vld [vmem:[#allocation2] sm:$0xff]
    %v292 = vpack.c.bf16 %v224, %v224
    %v309 = vunpack.c.l.b16 %v191
    %v310 = vunpack.c.l.b16 %v192
    %v311 = vunpack.c.l.b16 %v193
    %v312 = vunpack.c.l.b16 %v194
    %v313 = vunpack.c.l.b16 %v195
    %v314 = vunpack.c.l.b16 %v196
    %v315 = vunpack.c.l.b16 %v197
    %v316 = vunpack.c.l.b16 %v198
    %v317 = vunpack.c.l.b16 %v199
    %v318 = vunpack.c.l.b16 %v200
    %v319 = vunpack.c.l.b16 %v201
    %v320 = vunpack.c.l.b16 %v202
    %v321 = vunpack.c.l.b16 %v203
    %v322 = vunpack.c.l.b16 %v204
    %v323 = vunpack.c.l.b16 %v205
    %v324 = vunpack.c.l.b16 %v206
    %v325 = vpack.c.b16 %v310, %v309
    %v326 = vpack.c.b16 %v312, %v311
    %v327 = vpack.c.b16 %v314, %v313
    %v328 = vpack.c.b16 %v316, %v315
    %v329 = vpack.c.b16 %v318, %v317
    %v330 = vpack.c.b16 %v320, %v319
    %v331 = vpack.c.b16 %v322, %v321
    %v332 = vpack.c.b16 %v324, %v323
    %341 = vmatpush.bf16.msra.mxu0 %v332
    %342 = vmatpush.bf16.msra.mxu0 %v331
    %343 = vmatpush.bf16.msra.mxu0 %v330
    %344 = vmatpush.bf16.msra.mxu0 %v329
    %345 = vmatpush.bf16.msra.mxu0 %v328
    %346 = vmatpush.bf16.msra.mxu0 %v327
    %347 = vmatpush.bf16.msra.mxu0 %v326
    %348 = vmatpush.bf16.msra.mxu0 %v325
    %349 = vmatmul.bf16.gmra.mxu0 %v292
    %v350 = vpop.f32.mrf.mxu0
    %v351 = vadd.f32 0.0, %v350
    %v352 = vpop.f32.mrf.mxu0
    %353 = vdwg.mxu0
    %v354 = vadd.f32 %v291, %v351
    %v355 = vtanh.pop %v354
    %s356 = scalar_lea.vmem %s1, 4
    %v357 = vld [vmem:[%s356] sm:$0xf]
    %358 = vmatpush.bf16.msra.mxu0 %v268
    %359 = vmatpush.bf16.msra.mxu0 %v267
    %360 = vmatpush.bf16.msra.mxu0 %v266
    %361 = vmatpush.bf16.msra.mxu0 %v265
    %362 = vmatpush.bf16.msra.mxu0 %v264
    %363 = vmatpush.bf16.msra.mxu0 %v263
    %364 = vmatpush.bf16.msra.mxu0 %v262
    %365 = vmatpush.bf16.msra.mxu0 %v261
    %366 = vmatmul.bf16.gmra.mxu0 %v357
    %v367 = vpop.f32.mrf.mxu0
    %v368 = vadd.f32 %v227, %v367
    %v369 = vpop.f32.mrf.mxu0
    %370 = vdwg.mxu0
    %s371 = scalar_lea.vmem [#allocation3], 8
    %372 = vst [vmem:[%s371] sm:$0xff] %v368
    %s373 = scalar_lea.vmem [#allocation2], 8
    %v374 = vld [vmem:[%s373] sm:$0xff]
    %v375 = vpack.c.bf16 %v355, %v355
    %376 = vmatpush.bf16.msra.mxu0 %v332
    %377 = vmatpush.bf16.msra.mxu0 %v331
    %378 = vmatpush.bf16.msra.mxu0 %v330
    %379 = vmatpush.bf16.msra.mxu0 %v329
    %380 = vmatpush.bf16.msra.mxu0 %v328
    %381 = vmatpush.bf16.msra.mxu0 %v327
    %382 = vmatpush.bf16.msra.mxu0 %v326
    %383 = vmatpush.bf16.msra.mxu0 %v325
    %384 = vmatmul.bf16.gmra.mxu0 %v375
    %v385 = vpop.f32.mrf.mxu0
    %v386 = vadd.f32 0.0, %v385
    %v387 = vpop.f32.mrf.mxu0
    %388 = vdwg.mxu0
    %v389 = vadd.f32 %v374, %v386
    %v390 = vtanh.pop %v389
    %s391 = scalar_lea.vmem %s1, 8
    %v392 = vld [vmem:[%s391] sm:$0xf]
    %393 = vmatpush.bf16.msra.mxu0 %v268
    %394 = vmatpush.bf16.msra.mxu0 %v267
    %395 = vmatpush.bf16.msra.mxu0 %v266
    %396 = vmatpush.bf16.msra.mxu0 %v265
    %397 = vmatpush.bf16.msra.mxu0 %v264
    %398 = vmatpush.bf16.msra.mxu0 %v263
    %399 = vmatpush.bf16.msra.mxu0 %v262
    %400 = vmatpush.bf16.msra.mxu0 %v261
    %401 = vmatmul.bf16.gmra.mxu0 %v392
    %v402 = vpop.f32.mrf.mxu0
    %v403 = vadd.f32 %v227, %v402
    %v404 = vpop.f32.mrf.mxu0
    %405 = vdwg.mxu0
    %s406 = scalar_lea.vmem [#allocation3], 16
    %407 = vst [vmem:[%s406] sm:$0xff] %v403
    %s408 = scalar_lea.vmem [#allocation2], 16
    %v409 = vld [vmem:[%s408] sm:$0xff]
    %v410 = vpack.c.bf16 %v390, %v390
    %411 = vmatpush.bf16.msra.mxu0 %v332
    %412 = vmatpush.bf16.msra.mxu0 %v331
    %413 = vmatpush.bf16.msra.mxu0 %v330
    %414 = vmatpush.bf16.msra.mxu0 %v329
    %415 = vmatpush.bf16.msra.mxu0 %v328
    %416 = vmatpush.bf16.msra.mxu0 %v327
    %417 = vmatpush.bf16.msra.mxu0 %v326
    %418 = vmatpush.bf16.msra.mxu0 %v325
    %419 = vmatmul.bf16.gmra.mxu0 %v410
    %v420 = vpop.f32.mrf.mxu0
    %v421 = vadd.f32 0.0, %v420
    %v422 = vpop.f32.mrf.mxu0
    %423 = vdwg.mxu0
    %v424 = vadd.f32 %v409, %v421
    %v425 = vtanh.pop %v424
    %s426 = scalar_lea.vmem %s1, 12
    %v427 = vld [vmem:[%s426] sm:$0xf]
    %428 = vmatpush.bf16.msra.mxu0 %v268
    %429 = vmatpush.bf16.msra.mxu0 %v267
    %430 = vmatpush.bf16.msra.mxu0 %v266
    %431 = vmatpush.bf16.msra.mxu0 %v265
    %432 = vmatpush.bf16.msra.mxu0 %v264
    %433 = vmatpush.bf16.msra.mxu0 %v263
    %434 = vmatpush.bf16.msra.mxu0 %v262
    %435 = vmatpush.bf16.msra.mxu0 %v261
    %436 = vmatmul.bf16.gmra.mxu0 %v427
    %v437 = vpop.f32.mrf.mxu0
    %v438 = vadd.f32 %v227, %v437
    %v439 = vpop.f32.mrf.mxu0
    %440 = vdwg.mxu0
    %s441 = scalar_lea.vmem [#allocation3], 24
    %442 = vst [vmem:[%s441] sm:$0xff] %v438
    %s443 = scalar_lea.vmem [#allocation2], 24
    %v444 = vld [vmem:[%s443] sm:$0xff]
    %v445 = vpack.c.bf16 %v425, %v425
    %446 = vmatpush.bf16.msra.mxu0 %v332
    %447 = vmatpush.bf16.msra.mxu0 %v331
    %448 = vmatpush.bf16.msra.mxu0 %v330
    %449 = vmatpush.bf16.msra.mxu0 %v329
    %450 = vmatpush.bf16.msra.mxu0 %v328
    %451 = vmatpush.bf16.msra.mxu0 %v327
    %452 = vmatpush.bf16.msra.mxu0 %v326
    %453 = vmatpush.bf16.msra.mxu0 %v325
    %454 = vmatmul.bf16.gmra.mxu0 %v445
    %v455 = vpop.f32.mrf.mxu0
    %v456 = vadd.f32 0.0, %v455
    %v457 = vpop.f32.mrf.mxu0
    %458 = vdwg.mxu0
    %v459 = vadd.f32 %v444, %v456
    %v460 = vtanh.pop %v459
    %s461 = scalar_lea.vmem %s1, 16
    %v462 = vld [vmem:[%s461] sm:$0xf]
    %463 = vmatpush.bf16.msra.mxu0 %v268
    %464 = vmatpush.bf16.msra.mxu0 %v267
    %465 = vmatpush.bf16.msra.mxu0 %v266
    %466 = vmatpush.bf16.msra.mxu0 %v265
    %467 = vmatpush.bf16.msra.mxu0 %v264
    %468 = vmatpush.bf16.msra.mxu0 %v263
    %469 = vmatpush.bf16.msra.mxu0 %v262
    %470 = vmatpush.bf16.msra.mxu0 %v261
    %471 = vmatmul.bf16.gmra.mxu0 %v462
    %v472 = vpop.f32.mrf.mxu0
    %v473 = vadd.f32 %v227, %v472
    %v474 = vpop.f32.mrf.mxu0
    %475 = vdwg.mxu0
    %s476 = scalar_lea.vmem [#allocation3], 32
    %477 = vst [vmem:[%s476] sm:$0xff] %v473
    %s478 = scalar_lea.vmem [#allocation2], 32
    %v479 = vld [vmem:[%s478] sm:$0xff]
    %v480 = vpack.c.bf16 %v460, %v460
    %481 = vmatpush.bf16.msra.mxu0 %v332
    %482 = vmatpush.bf16.msra.mxu0 %v331
    %483 = vmatpush.bf16.msra.mxu0 %v330
    %484 = vmatpush.bf16.msra.mxu0 %v329
    %485 = vmatpush.bf16.msra.mxu0 %v328
    %486 = vmatpush.bf16.msra.mxu0 %v327
    %487 = vmatpush.bf16.msra.mxu0 %v326
    %488 = vmatpush.bf16.msra.mxu0 %v325
    %489 = vmatmul.bf16.gmra.mxu0 %v480
    %v490 = vpop.f32.mrf.mxu0
    %v491 = vadd.f32 0.0, %v490
    %v492 = vpop.f32.mrf.mxu0
    %493 = vdwg.mxu0
    %v494 = vadd.f32 %v479, %v491
    %v495 = vtanh.pop %v494
    %s496 = scalar_lea.vmem %s1, 20
    %v497 = vld [vmem:[%s496] sm:$0xf]
    %498 = vmatpush.bf16.msra.mxu0 %v268
    %499 = vmatpush.bf16.msra.mxu0 %v267
    %500 = vmatpush.bf16.msra.mxu0 %v266
    %501 = vmatpush.bf16.msra.mxu0 %v265
    %502 = vmatpush.bf16.msra.mxu0 %v264
    %503 = vmatpush.bf16.msra.mxu0 %v263
    %504 = vmatpush.bf16.msra.mxu0 %v262
    %505 = vmatpush.bf16.msra.mxu0 %v261
    %506 = vmatmul.bf16.gmra.mxu0 %v497
    %v507 = vpop.f32.mrf.mxu0
    %v508 = vadd.f32 %v227, %v507
    %v509 = vpop.f32.mrf.mxu0
    %510 = vdwg.mxu0
    %s511 = scalar_lea.vmem [#allocation3], 40
    %512 = vst [vmem:[%s511] sm:$0xff] %v508
    %s513 = scalar_lea.vmem [#allocation2], 40
    %v514 = vld [vmem:[%s513] sm:$0xff]
    %v515 = vpack.c.bf16 %v495, %v495
    %516 = vmatpush.bf16.msra.mxu0 %v332
    %517 = vmatpush.bf16.msra.mxu0 %v331
    %518 = vmatpush.bf16.msra.mxu0 %v330
    %519 = vmatpush.bf16.msra.mxu0 %v329
    %520 = vmatpush.bf16.msra.mxu0 %v328
    %521 = vmatpush.bf16.msra.mxu0 %v327
    %522 = vmatpush.bf16.msra.mxu0 %v326
    %523 = vmatpush.bf16.msra.mxu0 %v325
    %524 = vmatmul.bf16.gmra.mxu0 %v515
    %v525 = vpop.f32.mrf.mxu0
    %v526 = vadd.f32 0.0, %v525
    %v527 = vpop.f32.mrf.mxu0
    %528 = vdwg.mxu0
    %v529 = vadd.f32 %v514, %v526
    %v530 = vtanh.pop %v529
    %s531 = scalar_lea.vmem %s1, 24
    %v532 = vld [vmem:[%s531] sm:$0xf]
    %533 = vmatpush.bf16.msra.mxu0 %v268
    %534 = vmatpush.bf16.msra.mxu0 %v267
    %535 = vmatpush.bf16.msra.mxu0 %v266
    %536 = vmatpush.bf16.msra.mxu0 %v265
    %537 = vmatpush.bf16.msra.mxu0 %v264
    %538 = vmatpush.bf16.msra.mxu0 %v263
    %539 = vmatpush.bf16.msra.mxu0 %v262
    %540 = vmatpush.bf16.msra.mxu0 %v261
    %541 = vmatmul.bf16.gmra.mxu0 %v532
    %v542 = vpop.f32.mrf.mxu0
    %v543 = vadd.f32 %v227, %v542
    %v544 = vpop.f32.mrf.mxu0
    %545 = vdwg.mxu0
    %s546 = scalar_lea.vmem [#allocation3], 48
    %547 = vst [vmem:[%s546] sm:$0xff] %v543
    %s548 = scalar_lea.vmem [#allocation2], 48
    %v549 = vld [vmem:[%s548] sm:$0xff]
    %v550 = vpack.c.bf16 %v530, %v530
    %551 = vmatpush.bf16.msra.mxu0 %v332
    %552 = vmatpush.bf16.msra.mxu0 %v331
    %553 = vmatpush.bf16.msra.mxu0 %v330
    %554 = vmatpush.bf16.msra.mxu0 %v329
    %555 = vmatpush.bf16.msra.mxu0 %v328
    %556 = vmatpush.bf16.msra.mxu0 %v327
    %557 = vmatpush.bf16.msra.mxu0 %v326
    %558 = vmatpush.bf16.msra.mxu0 %v325
    %559 = vmatmul.bf16.gmra.mxu0 %v550
    %v560 = vpop.f32.mrf.mxu0
    %v561 = vadd.f32 0.0, %v560
    %v562 = vpop.f32.mrf.mxu0
    %563 = vdwg.mxu0
    %v564 = vadd.f32 %v549, %v561
    %v565 = vtanh.pop %v564
    %s566 = scalar_lea.vmem %s1, 28
    %v567 = vld [vmem:[%s566] sm:$0xf]
    %568 = vmatpush.bf16.msra.mxu0 %v268
    %569 = vmatpush.bf16.msra.mxu0 %v267
    %570 = vmatpush.bf16.msra.mxu0 %v266
    %571 = vmatpush.bf16.msra.mxu0 %v265
    %572 = vmatpush.bf16.msra.mxu0 %v264
    %573 = vmatpush.bf16.msra.mxu0 %v263
    %574 = vmatpush.bf16.msra.mxu0 %v262
    %575 = vmatpush.bf16.msra.mxu0 %v261
    %576 = vmatmul.bf16.gmra.mxu0 %v567
    %v577 = vpop.f32.mrf.mxu0
    %v578 = vadd.f32 %v227, %v577
    %v579 = vpop.f32.mrf.mxu0
    %580 = vdwg.mxu0
    %s581 = scalar_lea.vmem [#allocation3], 56
    %582 = vst [vmem:[%s581] sm:$0xff] %v578
    %s583 = scalar_lea.vmem [#allocation2], 56
    %v584 = vld [vmem:[%s583] sm:$0xff]
    %v585 = vpack.c.bf16 %v565, %v565
    %586 = vmatpush.bf16.msra.mxu0 %v332
    %587 = vmatpush.bf16.msra.mxu0 %v331
    %588 = vmatpush.bf16.msra.mxu0 %v330
    %589 = vmatpush.bf16.msra.mxu0 %v329
    %590 = vmatpush.bf16.msra.mxu0 %v328
    %591 = vmatpush.bf16.msra.mxu0 %v327
    %592 = vmatpush.bf16.msra.mxu0 %v326
    %593 = vmatpush.bf16.msra.mxu0 %v325
    %594 = vmatmul.bf16.gmra.mxu0 %v585
    %v595 = vpop.f32.mrf.mxu0
    %v596 = vadd.f32 0.0, %v595
    %v597 = vpop.f32.mrf.mxu0
    %598 = vdwg.mxu0
    %v599 = vadd.f32 %v584, %v596
    %v600 = vtanh.pop %v599
    %v601 = vld [vmem:[%s7] sm:$0xf]
    %v602 = vld [vmem:[%s7 + $0x4] sm:$0xf]
    %v603 = vld [vmem:[%s7 + $0x8] sm:$0xf]
    %v604 = vld [vmem:[%s7 + $0xc] sm:$0xf]
    %v605 = vld [vmem:[%s7 + $0x10] sm:$0xf]
    %v606 = vld [vmem:[%s7 + $0x14] sm:$0xf]
    %v607 = vld [vmem:[%s7 + $0x18] sm:$0xf]
    %v608 = vld [vmem:[%s7 + $0x1c] sm:$0xf]
    %v609 = vld [vmem:[%s7 + $0x20] sm:$0xf]
    %v610 = vld [vmem:[%s7 + $0x24] sm:$0xf]
    %v611 = vld [vmem:[%s7 + $0x28] sm:$0xf]
    %v612 = vld [vmem:[%s7 + $0x2c] sm:$0xf]
    %v613 = vld [vmem:[%s7 + $0x30] sm:$0xf]
    %v614 = vld [vmem:[%s7 + $0x34] sm:$0xf]
    %v615 = vld [vmem:[%s7 + $0x38] sm:$0xf]
    %v616 = vld [vmem:[%s7 + $0x3c] sm:$0xf]
    %v617 = vld [vmem:[#allocation4] sm:$0xf]
    %v618 = vld [vmem:[#allocation4 + $0x4] sm:$0xf]
    %v619 = vld [vmem:[#allocation4 + $0x8] sm:$0xf]
    %v620 = vld [vmem:[#allocation4 + $0xc] sm:$0xf]
    %v621 = vld [vmem:[#allocation4 + $0x10] sm:$0xf]
    %v622 = vld [vmem:[#allocation4 + $0x14] sm:$0xf]
    %v623 = vld [vmem:[#allocation4 + $0x18] sm:$0xf]
    %v624 = vld [vmem:[#allocation4 + $0x1c] sm:$0xf]
    %v625 = vld [vmem:[#allocation4 + $0x20] sm:$0xf]
    %v626 = vld [vmem:[#allocation4 + $0x24] sm:$0xf]
    %v627 = vld [vmem:[#allocation4 + $0x28] sm:$0xf]
    %v628 = vld [vmem:[#allocation4 + $0x2c] sm:$0xf]
    %v629 = vld [vmem:[#allocation4 + $0x30] sm:$0xf]
    %v630 = vld [vmem:[#allocation4 + $0x34] sm:$0xf]
    %v631 = vld [vmem:[#allocation4 + $0x38] sm:$0xf]
    %v632 = vld [vmem:[#allocation4 + $0x3c] sm:$0xf]
    %v633 = vld [vmem:[%s10] sm:$0x1]
    %v634 = vld [vmem:[#allocation3] sm:$0xff]
    %v635 = vpack.c.bf16 %v600, %v600
    %v652 = vunpack.c.l.b16 %v601
    %v653 = vunpack.c.l.b16 %v602
    %v654 = vunpack.c.l.b16 %v603
    %v655 = vunpack.c.l.b16 %v604
    %v656 = vunpack.c.l.b16 %v605
    %v657 = vunpack.c.l.b16 %v606
    %v658 = vunpack.c.l.b16 %v607
    %v659 = vunpack.c.l.b16 %v608
    %v660 = vunpack.c.l.b16 %v609
    %v661 = vunpack.c.l.b16 %v610
    %v662 = vunpack.c.l.b16 %v611
    %v663 = vunpack.c.l.b16 %v612
    %v664 = vunpack.c.l.b16 %v613
    %v665 = vunpack.c.l.b16 %v614
    %v666 = vunpack.c.l.b16 %v615
    %v667 = vunpack.c.l.b16 %v616
    %v668 = vpack.c.b16 %v653, %v652
    %v669 = vpack.c.b16 %v655, %v654
    %v670 = vpack.c.b16 %v657, %v656
    %v671 = vpack.c.b16 %v659, %v658
    %v672 = vpack.c.b16 %v661, %v660
    %v673 = vpack.c.b16 %v663, %v662
    %v674 = vpack.c.b16 %v665, %v664
    %v675 = vpack.c.b16 %v667, %v666
    %684 = vmatpush.bf16.msra.mxu0 %v675
    %685 = vmatpush.bf16.msra.mxu0 %v674
    %686 = vmatpush.bf16.msra.mxu0 %v673
    %687 = vmatpush.bf16.msra.mxu0 %v672
    %688 = vmatpush.bf16.msra.mxu0 %v671
    %689 = vmatpush.bf16.msra.mxu0 %v670
    %690 = vmatpush.bf16.msra.mxu0 %v669
    %691 = vmatpush.bf16.msra.mxu0 %v668
    %692 = vmatmul.bf16.gmra.mxu0 %v635
    %v693 = vpop.f32.mrf.mxu0
    %v694 = vadd.f32 0.0, %v693
    %v695 = vpop.f32.mrf.mxu0
    %696 = vdwg.mxu0
    %v697 = vadd.f32 %v634, %v694
    %v698 = vtanh.pop %v697
    %v699 = vpack.c.bf16 %v698, %v698
    %v701 = vperm.slane %v633, 0
    %v719 = vunpack.c.l.b16 %v617
    %v720 = vunpack.c.l.b16 %v618
    %v721 = vunpack.c.l.b16 %v619
    %v722 = vunpack.c.l.b16 %v620
    %v723 = vunpack.c.l.b16 %v621
    %v724 = vunpack.c.l.b16 %v622
    %v725 = vunpack.c.l.b16 %v623
    %v726 = vunpack.c.l.b16 %v624
    %v727 = vunpack.c.l.b16 %v625
    %v728 = vunpack.c.l.b16 %v626
    %v729 = vunpack.c.l.b16 %v627
    %v730 = vunpack.c.l.b16 %v628
    %v731 = vunpack.c.l.b16 %v629
    %v732 = vunpack.c.l.b16 %v630
    %v733 = vunpack.c.l.b16 %v631
    %v734 = vunpack.c.l.b16 %v632
    %v735 = vpack.c.b16 %v720, %v719
    %v736 = vpack.c.b16 %v722, %v721
    %v737 = vpack.c.b16 %v724, %v723
    %v738 = vpack.c.b16 %v726, %v725
    %v739 = vpack.c.b16 %v728, %v727
    %v740 = vpack.c.b16 %v730, %v729
    %v741 = vpack.c.b16 %v732, %v731
    %v742 = vpack.c.b16 %v734, %v733
    %751 = vmatpush.bf16.msra.mxu0 %v742
    %752 = vmatpush.bf16.msra.mxu0 %v741
    %753 = vmatpush.bf16.msra.mxu0 %v740
    %754 = vmatpush.bf16.msra.mxu0 %v739
    %755 = vmatpush.bf16.msra.mxu0 %v738
    %756 = vmatpush.bf16.msra.mxu0 %v737
    %757 = vmatpush.bf16.msra.mxu0 %v736
    %758 = vmatpush.bf16.msra.mxu0 %v735
    %759 = vmatmul.bf16.gmra.mxu0 %v699
    %v760 = vpop.f32.mrf.mxu0
    %v761 = vadd.f32 %v701, %v760
    %v762 = vpop.f32.mrf.mxu0
    %763 = vdwg.mxu0
    %764 = vst [vmem:[%s11] sm:$0xff] %v761
    %v765 = vld [vmem:[%s371] sm:$0xff]
    %766 = vmatpush.bf16.msra.mxu0 %v675
    %767 = vmatpush.bf16.msra.mxu0 %v674
    %768 = vmatpush.bf16.msra.mxu0 %v673
    %769 = vmatpush.bf16.msra.mxu0 %v672
    %770 = vmatpush.bf16.msra.mxu0 %v671
    %771 = vmatpush.bf16.msra.mxu0 %v670
    %772 = vmatpush.bf16.msra.mxu0 %v669
    %773 = vmatpush.bf16.msra.mxu0 %v668
    %774 = vmatmul.bf16.gmra.mxu0 %v699
    %v775 = vpop.f32.mrf.mxu0
    %v776 = vadd.f32 0.0, %v775
    %v777 = vpop.f32.mrf.mxu0
    %778 = vdwg.mxu0
    %v779 = vadd.f32 %v765, %v776
    %v780 = vtanh.pop %v779
    %v781 = vpack.c.bf16 %v780, %v780
    %782 = vmatpush.bf16.msra.mxu0 %v742
    %783 = vmatpush.bf16.msra.mxu0 %v741
    %784 = vmatpush.bf16.msra.mxu0 %v740
    %785 = vmatpush.bf16.msra.mxu0 %v739
    %786 = vmatpush.bf16.msra.mxu0 %v738
    %787 = vmatpush.bf16.msra.mxu0 %v737
    %788 = vmatpush.bf16.msra.mxu0 %v736
    %789 = vmatpush.bf16.msra.mxu0 %v735
    %790 = vmatmul.bf16.gmra.mxu0 %v781
    %v791 = vpop.f32.mrf.mxu0
    %v792 = vadd.f32 %v701, %v791
    %v793 = vpop.f32.mrf.mxu0
    %794 = vdwg.mxu0
    %s795 = scalar_lea.vmem %s11, 8
    %796 = vst [vmem:[%s795] sm:$0xff] %v792
    %v797 = vld [vmem:[%s406] sm:$0xff]
    %798 = vmatpush.bf16.msra.mxu0 %v675
    %799 = vmatpush.bf16.msra.mxu0 %v674
    %800 = vmatpush.bf16.msra.mxu0 %v673
    %801 = vmatpush.bf16.msra.mxu0 %v672
    %802 = vmatpush.bf16.msra.mxu0 %v671
    %803 = vmatpush.bf16.msra.mxu0 %v670
    %804 = vmatpush.bf16.msra.mxu0 %v669
    %805 = vmatpush.bf16.msra.mxu0 %v668
    %806 = vmatmul.bf16.gmra.mxu0 %v781
    %v807 = vpop.f32.mrf.mxu0
    %v808 = vadd.f32 0.0, %v807
    %v809 = vpop.f32.mrf.mxu0
    %810 = vdwg.mxu0
    %v811 = vadd.f32 %v797, %v808
    %v812 = vtanh.pop %v811
    %v813 = vpack.c.bf16 %v812, %v812
    %814 = vmatpush.bf16.msra.mxu0 %v742
    %815 = vmatpush.bf16.msra.mxu0 %v741
    %816 = vmatpush.bf16.msra.mxu0 %v740
    %817 = vmatpush.bf16.msra.mxu0 %v739
    %818 = vmatpush.bf16.msra.mxu0 %v738
    %819 = vmatpush.bf16.msra.mxu0 %v737
    %820 = vmatpush.bf16.msra.mxu0 %v736
    %821 = vmatpush.bf16.msra.mxu0 %v735
    %822 = vmatmul.bf16.gmra.mxu0 %v813
    %v823 = vpop.f32.mrf.mxu0
    %v824 = vadd.f32 %v701, %v823
    %v825 = vpop.f32.mrf.mxu0
    %826 = vdwg.mxu0
    %s827 = scalar_lea.vmem %s11, 16
    %828 = vst [vmem:[%s827] sm:$0xff] %v824
    %v829 = vld [vmem:[%s441] sm:$0xff]
    %830 = vmatpush.bf16.msra.mxu0 %v675
    %831 = vmatpush.bf16.msra.mxu0 %v674
    %832 = vmatpush.bf16.msra.mxu0 %v673
    %833 = vmatpush.bf16.msra.mxu0 %v672
    %834 = vmatpush.bf16.msra.mxu0 %v671
    %835 = vmatpush.bf16.msra.mxu0 %v670
    %836 = vmatpush.bf16.msra.mxu0 %v669
    %837 = vmatpush.bf16.msra.mxu0 %v668
    %838 = vmatmul.bf16.gmra.mxu0 %v813
    %v839 = vpop.f32.mrf.mxu0
    %v840 = vadd.f32 0.0, %v839
    %v841 = vpop.f32.mrf.mxu0
    %842 = vdwg.mxu0
    %v843 = vadd.f32 %v829, %v840
    %v844 = vtanh.pop %v843
    %v845 = vpack.c.bf16 %v844, %v844
    %846 = vmatpush.bf16.msra.mxu0 %v742
    %847 = vmatpush.bf16.msra.mxu0 %v741
    %848 = vmatpush.bf16.msra.mxu0 %v740
    %849 = vmatpush.bf16.msra.mxu0 %v739
    %850 = vmatpush.bf16.msra.mxu0 %v738
    %851 = vmatpush.bf16.msra.mxu0 %v737
    %852 = vmatpush.bf16.msra.mxu0 %v736
    %853 = vmatpush.bf16.msra.mxu0 %v735
    %854 = vmatmul.bf16.gmra.mxu0 %v845
    %v855 = vpop.f32.mrf.mxu0
    %v856 = vadd.f32 %v701, %v855
    %v857 = vpop.f32.mrf.mxu0
    %858 = vdwg.mxu0
    %s859 = scalar_lea.vmem %s11, 24
    %860 = vst [vmem:[%s859] sm:$0xff] %v856
    %v861 = vld [vmem:[%s476] sm:$0xff]
    %862 = vmatpush.bf16.msra.mxu0 %v675
    %863 = vmatpush.bf16.msra.mxu0 %v674
    %864 = vmatpush.bf16.msra.mxu0 %v673
    %865 = vmatpush.bf16.msra.mxu0 %v672
    %866 = vmatpush.bf16.msra.mxu0 %v671
    %867 = vmatpush.bf16.msra.mxu0 %v670
    %868 = vmatpush.bf16.msra.mxu0 %v669
    %869 = vmatpush.bf16.msra.mxu0 %v668
    %870 = vmatmul.bf16.gmra.mxu0 %v845
    %v871 = vpop.f32.mrf.mxu0
    %v872 = vadd.f32 0.0, %v871
    %v873 = vpop.f32.mrf.mxu0
    %874 = vdwg.mxu0
    %v875 = vadd.f32 %v861, %v872
    %v876 = vtanh.pop %v875
    %v877 = vpack.c.bf16 %v876, %v876
    %878 = vmatpush.bf16.msra.mxu0 %v742
    %879 = vmatpush.bf16.msra.mxu0 %v741
    %880 = vmatpush.bf16.msra.mxu0 %v740
    %881 = vmatpush.bf16.msra.mxu0 %v739
    %882 = vmatpush.bf16.msra.mxu0 %v738
    %883 = vmatpush.bf16.msra.mxu0 %v737
    %884 = vmatpush.bf16.msra.mxu0 %v736
    %885 = vmatpush.bf16.msra.mxu0 %v735
    %886 = vmatmul.bf16.gmra.mxu0 %v877
    %v887 = vpop.f32.mrf.mxu0
    %v888 = vadd.f32 %v701, %v887
    %v889 = vpop.f32.mrf.mxu0
    %890 = vdwg.mxu0
    %s891 = scalar_lea.vmem %s11, 32
    %892 = vst [vmem:[%s891] sm:$0xff] %v888
    %v893 = vld [vmem:[%s511] sm:$0xff]
    %894 = vmatpush.bf16.msra.mxu0 %v675
    %895 = vmatpush.bf16.msra.mxu0 %v674
    %896 = vmatpush.bf16.msra.mxu0 %v673
    %897 = vmatpush.bf16.msra.mxu0 %v672
    %898 = vmatpush.bf16.msra.mxu0 %v671
    %899 = vmatpush.bf16.msra.mxu0 %v670
    %900 = vmatpush.bf16.msra.mxu0 %v669
    %901 = vmatpush.bf16.msra.mxu0 %v668
    %902 = vmatmul.bf16.gmra.mxu0 %v877
    %v903 = vpop.f32.mrf.mxu0
    %v904 = vadd.f32 0.0, %v903
    %v905 = vpop.f32.mrf.mxu0
    %906 = vdwg.mxu0
    %v907 = vadd.f32 %v893, %v904
    %v908 = vtanh.pop %v907
    %v909 = vpack.c.bf16 %v908, %v908
    %910 = vmatpush.bf16.msra.mxu0 %v742
    %911 = vmatpush.bf16.msra.mxu0 %v741
    %912 = vmatpush.bf16.msra.mxu0 %v740
    %913 = vmatpush.bf16.msra.mxu0 %v739
    %914 = vmatpush.bf16.msra.mxu0 %v738
    %915 = vmatpush.bf16.msra.mxu0 %v737
    %916 = vmatpush.bf16.msra.mxu0 %v736
    %917 = vmatpush.bf16.msra.mxu0 %v735
    %918 = vmatmul.bf16.gmra.mxu0 %v909
    %v919 = vpop.f32.mrf.mxu0
    %v920 = vadd.f32 %v701, %v919
    %v921 = vpop.f32.mrf.mxu0
    %922 = vdwg.mxu0
    %s923 = scalar_lea.vmem %s11, 40
    %924 = vst [vmem:[%s923] sm:$0xff] %v920
    %v925 = vld [vmem:[%s546] sm:$0xff]
    %926 = vmatpush.bf16.msra.mxu0 %v675
    %927 = vmatpush.bf16.msra.mxu0 %v674
    %928 = vmatpush.bf16.msra.mxu0 %v673
    %929 = vmatpush.bf16.msra.mxu0 %v672
    %930 = vmatpush.bf16.msra.mxu0 %v671
    %931 = vmatpush.bf16.msra.mxu0 %v670
    %932 = vmatpush.bf16.msra.mxu0 %v669
    %933 = vmatpush.bf16.msra.mxu0 %v668
    %934 = vmatmul.bf16.gmra.mxu0 %v909
    %v935 = vpop.f32.mrf.mxu0
    %v936 = vadd.f32 0.0, %v935
    %v937 = vpop.f32.mrf.mxu0
    %938 = vdwg.mxu0
    %v939 = vadd.f32 %v925, %v936
    %v940 = vtanh.pop %v939
    %v941 = vpack.c.bf16 %v940, %v940
    %942 = vmatpush.bf16.msra.mxu0 %v742
    %943 = vmatpush.bf16.msra.mxu0 %v741
    %944 = vmatpush.bf16.msra.mxu0 %v740
    %945 = vmatpush.bf16.msra.mxu0 %v739
    %946 = vmatpush.bf16.msra.mxu0 %v738
    %947 = vmatpush.bf16.msra.mxu0 %v737
    %948 = vmatpush.bf16.msra.mxu0 %v736
    %949 = vmatpush.bf16.msra.mxu0 %v735
    %950 = vmatmul.bf16.gmra.mxu0 %v941
    %v951 = vpop.f32.mrf.mxu0
    %v952 = vadd.f32 %v701, %v951
    %v953 = vpop.f32.mrf.mxu0
    %954 = vdwg.mxu0
    %s955 = scalar_lea.vmem %s11, 48
    %956 = vst [vmem:[%s955] sm:$0xff] %v952
    %v957 = vld [vmem:[%s581] sm:$0xff]
    %958 = vmatpush.bf16.msra.mxu0 %v675
    %959 = vmatpush.bf16.msra.mxu0 %v674
    %960 = vmatpush.bf16.msra.mxu0 %v673
    %961 = vmatpush.bf16.msra.mxu0 %v672
    %962 = vmatpush.bf16.msra.mxu0 %v671
    %963 = vmatpush.bf16.msra.mxu0 %v670
    %964 = vmatpush.bf16.msra.mxu0 %v669
    %965 = vmatpush.bf16.msra.mxu0 %v668
    %966 = vmatmul.bf16.gmra.mxu0 %v941
    %v967 = vpop.f32.mrf.mxu0
    %v968 = vadd.f32 0.0, %v967
    %v969 = vpop.f32.mrf.mxu0
    %970 = vdwg.mxu0
    %v971 = vadd.f32 %v957, %v968
    %v972 = vtanh.pop %v971
    %v973 = vpack.c.bf16 %v972, %v972
    %974 = vmatpush.bf16.msra.mxu0 %v742
    %975 = vmatpush.bf16.msra.mxu0 %v741
    %976 = vmatpush.bf16.msra.mxu0 %v740
    %977 = vmatpush.bf16.msra.mxu0 %v739
    %978 = vmatpush.bf16.msra.mxu0 %v738
    %979 = vmatpush.bf16.msra.mxu0 %v737
    %980 = vmatpush.bf16.msra.mxu0 %v736
    %981 = vmatpush.bf16.msra.mxu0 %v735
    %982 = vmatmul.bf16.gmra.mxu0 %v973
    %v983 = vpop.f32.mrf.mxu0
    %v984 = vadd.f32 %v701, %v983
    %v985 = vpop.f32.mrf.mxu0
    %986 = vdwg.mxu0
    %s987 = scalar_lea.vmem %s11, 56
    %988 = vst [vmem:[%s987] sm:$0xff] %v984
    // Predicated region
    $region50: #{seq2seq_forward.1} parent=1 // pred_check
      _
    $region51: #{seq2seq_forward.1} parent=1 // pred_check_branch
      %990 = sbr.rel (0) target = $region53
    $region52: #{seq2seq_forward.1} parent=1 // pred_region
      _
    $region53: #{seq2seq_forward.1} parent=1 // pred_fallthru
      _
    // Predicated region
    $region54: #{seq2seq_forward.1} parent=1 // pred_check
      _
    $region55: #{seq2seq_forward.1} parent=1 // pred_check_branch
      %992 = sbr.rel (0) target = $region57
    $region56: #{seq2seq_forward.1} parent=1 // pred_region
      _
    $region57: #{seq2seq_forward.1} parent=1 // pred_fallthru
      _
    %993 = vsyncpa [#allocation5], 1

</llo_original>
